<compile_context>
chip_gen: v6e
topology: v6e:2x2x1
jax: 0.10.0
libtpu: 0.0.40
codegen_flags: <defaults>
</compile_context>

<pallas_src>
import functools

import jax
import jax.numpy as jnp
from jax.experimental import pallas as pl
from jax.experimental.pallas import tpu as pltpu

LANE = 128


def _round_up(n, m):
    return (n + m - 1) // m * m


# ---------------------------------------------------------------------------
# Pallas kernel
# ---------------------------------------------------------------------------
def dp_kernel(x_ref,
              w1a_ref, b1a_ref, w2a_ref, b2a_ref, g1_ref, be1_ref,
              w1b_ref, b1b_ref, w2b_ref, b2b_ref, g2_ref, be2_ref,
              wl_ref, bl_ref,
              out_ref, *, kernel_sz, d_real):
    K = kernel_sz
    pad = (K - 1) // 2
    Bb, S, Dp = x_ref.shape
    x = x_ref[...].reshape(Bb * S, Dp)                   # (Bb*S, Dp) f32

    def conv_relu(a, w_ref, b_ref):
        # a: (Bb*S, Cin_p) f32, rows grouped per batch element (S rows each).
        # Conv1d('same') along the sequence axis via im2col: build the
        # (rows, K*Cin_p) slab from in-register shifted copies (boundary zeros
        # live in registers), then a single MXU dot with contraction K*Cin_p.
        Cin = a.shape[-1]
        slabs = []
        for bi in range(Bb):                             # static unroll
            ab = a[bi * S:(bi + 1) * S, :]               # (S, Cin), aligned slice
            if pad > 0:
                z = jnp.zeros((pad, Cin), jnp.float32)
                ap = jnp.concatenate([z, ab, z], axis=0)  # (S + K - 1, Cin)
            else:
                ap = ab
            taps = [ap[k:k + S, :] for k in range(K)]
            slabs.append(jnp.concatenate(taps, axis=-1) if K > 1 else taps[0])
        slab = jnp.concatenate(slabs, axis=0) if Bb > 1 else slabs[0]
        h = jnp.dot(slab.astype(jnp.bfloat16), w_ref[...],
                    preferred_element_type=jnp.float32) + b_ref[...]
        return jnp.maximum(h, 0.0)                       # (Bb*S, Cout_p) f32

    inv_d = 1.0 / float(d_real)

    def layer_norm(h, g_ref, b_ref):
        # h: (rows, Dp). Lanes >= d_real hold exact zeros and gamma/beta are
        # zero there, so sums over Dp equal sums over the real channels and
        # the padded lanes stay zero on output. Math in f32.
        mean = jnp.sum(h, axis=-1, keepdims=True) * inv_d
        ex2 = jnp.sum(h * h, axis=-1, keepdims=True) * inv_d
        var = ex2 - mean * mean
        return (h - mean) * jax.lax.rsqrt(var + 1e-5) * g_ref[...] + b_ref[...]

    # ConvNet1d #1
    h = conv_relu(x, w1a_ref, b1a_ref)                   # (Bb*S, Fp)
    h = conv_relu(h, w2a_ref, b2a_ref)                   # (Bb*S, Dp)
    h = layer_norm(h, g1_ref, be1_ref)
    # TODO(synk): training-mode Dropout(p=0.5) not implemented; eval mode (identity) only.
    # ConvNet1d #2
    h = conv_relu(h, w1b_ref, b1b_ref)
    h = conv_relu(h, w2b_ref, b2b_ref)
    h = layer_norm(h, g2_ref, be2_ref)
    # Linear(d_model -> 1), padded to 128 output lanes (only lane 0 is real).
    y = jnp.dot(h.astype(jnp.bfloat16), wl_ref[...],
                preferred_element_type=jnp.float32) + bl_ref[...]
    out_ref[...] = y.reshape(Bb, S, -1).astype(out_ref.dtype)


# ---------------------------------------------------------------------------
# Wrapper
# ---------------------------------------------------------------------------
def duration_predictor(x, kparams, *, kernel_sz, batch_block=1):
    (w1a, b1a, w2a, b2a, g1, be1,
     w1b, b1b, w2b, b2b, g2, be2, wl, bl) = kparams
    B, S, D = x.shape
    Dp = g1.shape[-1]
    OUTP = wl.shape[-1]
    Bb = batch_block
    assert B % Bb == 0, "batch must be divisible by batch_block"

    # lane-dense input: zero-pad the feature axis up to a multiple of 128
    xpad = jnp.zeros((B, S, Dp), jnp.float32).at[..., :D].set(
        x.astype(jnp.float32))

    params = (w1a, b1a, w2a, b2a, g1, be1, w1b, b1b, w2b, b2b, g2, be2, wl, bl)
    param_specs = [pl.BlockSpec(p.shape, lambda b, nd=p.ndim: (0,) * nd)
                   for p in params]

    kern = functools.partial(dp_kernel, kernel_sz=kernel_sz, d_real=D)
    out = pl.pallas_call(
        kern,
        out_shape=jax.ShapeDtypeStruct((B, S, OUTP), jnp.float32),
        grid_spec=pltpu.PrefetchScalarGridSpec(
            num_scalar_prefetch=0,
            grid=(B // Bb,),
            in_specs=[pl.BlockSpec((Bb, S, Dp), lambda b: (b, 0, 0))]
                     + param_specs,
            out_specs=pl.BlockSpec((Bb, S, OUTP), lambda b: (b, 0, 0)),
        ),
        compiler_params=pltpu.CompilerParams(
            dimension_semantics=("parallel",),
            vmem_limit_bytes=32 * 1024 * 1024),
    )(xpad, *params)
    return out[..., :1]                                  # (B, S, 1)


# ---------------------------------------------------------------------------
# Deterministic parameter init (torch shapes) + packing into kernel layout
# ---------------------------------------------------------------------------
def init_torch_params(key, d_model, filter_sz, kernel_sz):
    gain = (2.0 / 5.0) ** 0.5
    ks = jax.random.split(key, 6)

    def xavier_conv(k, out_ch, in_ch):
        fan_in = in_ch * kernel_sz
        fan_out = out_ch * kernel_sz
        std = gain * (2.0 / (fan_in + fan_out)) ** 0.5
        return jax.random.normal(k, (out_ch, in_ch, kernel_sz), jnp.float32) * std

    return dict(
        w1a=xavier_conv(ks[0], filter_sz, d_model),
        b1a=jnp.zeros((filter_sz,), jnp.float32),
        w2a=xavier_conv(ks[1], d_model, filter_sz),
        b2a=jnp.zeros((d_model,), jnp.float32),
        g1=jnp.ones((d_model,), jnp.float32),
        be1=jnp.zeros((d_model,), jnp.float32),
        w1b=xavier_conv(ks[2], filter_sz, d_model),
        b1b=jnp.zeros((filter_sz,), jnp.float32),
        w2b=xavier_conv(ks[3], d_model, filter_sz),
        b2b=jnp.zeros((d_model,), jnp.float32),
        g2=jnp.ones((d_model,), jnp.float32),
        be2=jnp.zeros((d_model,), jnp.float32),
        wl=jax.random.normal(ks[4], (1, d_model), jnp.float32) / (d_model ** 0.5),
        bl=jax.random.normal(ks[5], (1,), jnp.float32) * 0.1,
    )


def _bf16_round(w):
    return w.astype(jnp.bfloat16).astype(jnp.float32)


def pack_params(tp, d_model, filter_sz, kernel_sz):
    Dp = _round_up(d_model, LANE)
    Fp = _round_up(filter_sz, LANE)
    OUTP = LANE
    K = kernel_sz

    def pack_conv_w(w, cin_p, cout_p):
        # torch (Cout, Cin, K)  ->  im2col weight (K*Cin_p, Cout_p), bf16
        cout, cin, _ = w.shape
        wkt = jnp.transpose(w, (2, 1, 0))                # (K, Cin, Cout)
        wp = jnp.zeros((K, cin_p, cout_p), jnp.float32).at[:, :cin, :cout].set(wkt)
        return wp.reshape(K * cin_p, cout_p).astype(jnp.bfloat16)

    def pad_row(v, n):
        return jnp.zeros((1, n), jnp.float32).at[0, :v.shape[0]].set(v)

    wlin = jnp.zeros((Dp, OUTP), jnp.float32).at[:d_model, 0].set(tp["wl"][0])
    blin = jnp.zeros((1, OUTP), jnp.float32).at[0, 0].set(tp["bl"][0])

    return (
        pack_conv_w(tp["w1a"], Dp, Fp), pad_row(tp["b1a"], Fp),
        pack_conv_w(tp["w2a"], Fp, Dp), pad_row(tp["b2a"], Dp),
        pad_row(tp["g1"], Dp), pad_row(tp["be1"], Dp),
        pack_conv_w(tp["w1b"], Dp, Fp), pad_row(tp["b1b"], Fp),
        pack_conv_w(tp["w2b"], Fp, Dp), pad_row(tp["b2b"], Dp),
        pad_row(tp["g2"], Dp), pad_row(tp["be2"], Dp),
        wlin.astype(jnp.bfloat16), blin,
    )


# ---------------------------------------------------------------------------
# Pure-JAX reference (f32) for verification
# ---------------------------------------------------------------------------
def _conv1d_same(x, w, b, K):
    B, S, _ = x.shape
    pad = (K - 1) // 2
    xp = jnp.pad(x, ((0, 0), (pad, pad), (0, 0)))
    wkt = jnp.transpose(w, (2, 1, 0))                    # (K, Cin, Cout)
    return sum(xp[:, k:k + S, :] @ wkt[k] for k in range(K)) + b


def _layer_norm_ref(x, g, b, eps=1e-5):
    m = jnp.mean(x, axis=-1, keepdims=True)
    v = jnp.mean((x - m) ** 2, axis=-1, keepdims=True)
    return (x - m) * jax.lax.rsqrt(v + eps) * g + b


def reference(x, tp, K):
    h = jax.nn.relu(_conv1d_same(x, tp["w1a"], tp["b1a"], K))
    h = jax.nn.relu(_conv1d_same(h, tp["w2a"], tp["b2a"], K))
    h = _layer_norm_ref(h, tp["g1"], tp["be1"])
    h = jax.nn.relu(_conv1d_same(h, tp["w1b"], tp["b1b"], K))
    h = jax.nn.relu(_conv1d_same(h, tp["w2b"], tp["b2b"], K))
    h = _layer_norm_ref(h, tp["g2"], tp["be2"])
    return h @ tp["wl"].T + tp["bl"]                     # (B, S, 1)


if __name__ == "__main__":
    B, S = 4, 8
    d_model, filter_sz, kernel_sz = 32, 64, 3

    key = jax.random.PRNGKey(0)
    kx, kp = jax.random.split(key)
    x = jax.random.normal(kx, (B, S, d_model), jnp.float32)

    tp = init_torch_params(kp, d_model, filter_sz, kernel_sz)
    # Round the matmul weights through bf16 once so the kernel (bf16 MXU
    # operands) and the f32 reference share identical weight values.
    for name in ("w1a", "w2a", "w1b", "w2b", "wl"):
        tp[name] = _bf16_round(tp[name])

    kparams = pack_params(tp, d_model, filter_sz, kernel_sz)

    out = duration_predictor(x, kparams, kernel_sz=kernel_sz, batch_block=2)
    out = jax.block_until_ready(out)

    ref = reference(x, tp, kernel_sz)
    assert out.shape == (B, S, 1), out.shape
    max_err = float(jnp.max(jnp.abs(out - ref)))
    assert jnp.allclose(out, ref, rtol=2e-2, atol=2e-2), f"max abs diff {max_err}"
    print("KERNEL_OK")
</pallas_src>

<mosaic_0001>
module attributes {stable_mosaic.version = 11 : i64} {
  func.func @dp_kernel(%arg0: i32, %arg1: memref<2x8x128xf32, #tpu.memory_space<vmem>>, %arg2: memref<384x128xbf16, #tpu.memory_space<vmem>>, %arg3: memref<1x128xf32, #tpu.memory_space<vmem>>, %arg4: memref<384x128xbf16, #tpu.memory_space<vmem>>, %arg5: memref<1x128xf32, #tpu.memory_space<vmem>>, %arg6: memref<1x128xf32, #tpu.memory_space<vmem>>, %arg7: memref<1x128xf32, #tpu.memory_space<vmem>>, %arg8: memref<384x128xbf16, #tpu.memory_space<vmem>>, %arg9: memref<1x128xf32, #tpu.memory_space<vmem>>, %arg10: memref<384x128xbf16, #tpu.memory_space<vmem>>, %arg11: memref<1x128xf32, #tpu.memory_space<vmem>>, %arg12: memref<1x128xf32, #tpu.memory_space<vmem>>, %arg13: memref<1x128xf32, #tpu.memory_space<vmem>>, %arg14: memref<128x128xbf16, #tpu.memory_space<vmem>>, %arg15: memref<1x128xf32, #tpu.memory_space<vmem>>, %arg16: memref<2x8x128xf32, #tpu.memory_space<vmem>>) attributes {dimension_semantics = [#tpu.dimension_semantics<parallel>], iteration_bounds = array<i64: 2>, scalar_prefetch = 0 : i64, scratch_operands = 0 : i64, tpu.core_type = #tpu.core_type<tc>, window_params = [{transform_indices = @transform_0, window_bounds = array<i64: 2, 8, 128>}, {pipeline_mode = #tpu.pipeline_mode<synchronous>, transform_indices = @transform_1, window_bounds = array<i64: 384, 128>}, {pipeline_mode = #tpu.pipeline_mode<synchronous>, transform_indices = @transform_2, window_bounds = array<i64: 1, 128>}, {pipeline_mode = #tpu.pipeline_mode<synchronous>, transform_indices = @transform_3, window_bounds = array<i64: 384, 128>}, {pipeline_mode = #tpu.pipeline_mode<synchronous>, transform_indices = @transform_4, window_bounds = array<i64: 1, 128>}, {pipeline_mode = #tpu.pipeline_mode<synchronous>, transform_indices = @transform_5, window_bounds = array<i64: 1, 128>}, {pipeline_mode = #tpu.pipeline_mode<synchronous>, transform_indices = @transform_6, window_bounds = array<i64: 1, 128>}, {pipeline_mode = #tpu.pipeline_mode<synchronous>, transform_indices = @transform_7, window_bounds = array<i64: 384, 128>}, {pipeline_mode = #tpu.pipeline_mode<synchronous>, transform_indices = @transform_8, window_bounds = array<i64: 1, 128>}, {pipeline_mode = #tpu.pipeline_mode<synchronous>, transform_indices = @transform_9, window_bounds = array<i64: 384, 128>}, {pipeline_mode = #tpu.pipeline_mode<synchronous>, transform_indices = @transform_10, window_bounds = array<i64: 1, 128>}, {pipeline_mode = #tpu.pipeline_mode<synchronous>, transform_indices = @transform_11, window_bounds = array<i64: 1, 128>}, {pipeline_mode = #tpu.pipeline_mode<synchronous>, transform_indices = @transform_12, window_bounds = array<i64: 1, 128>}, {pipeline_mode = #tpu.pipeline_mode<synchronous>, transform_indices = @transform_13, window_bounds = array<i64: 128, 128>}, {pipeline_mode = #tpu.pipeline_mode<synchronous>, transform_indices = @transform_14, window_bounds = array<i64: 1, 128>}, {transform_indices = @transform_15, window_bounds = array<i64: 2, 8, 128>}]} {
    %c0 = arith.constant 0 : index
    %c0_0 = arith.constant 0 : index
    %c0_1 = arith.constant 0 : index
    %0 = vector.load %arg1[%c0, %c0_0, %c0_1] : memref<2x8x128xf32, #tpu.memory_space<vmem>>, vector<2x8x128xf32>
    %1 = vector.shape_cast %0 : vector<2x8x128xf32> to vector<16x128xf32>
    %2 = vector.extract_strided_slice %1 {offsets = [0, 0], sizes = [8, 128], strides = [1, 1]} : vector<16x128xf32> to vector<8x128xf32>
    %cst = arith.constant 0.000000e+00 : f32
    %3 = vector.broadcast %cst : f32 to vector<1x128xf32>
    %4 = tpu.concatenate %3, %2, %3 in 0 : vector<1x128xf32>, vector<8x128xf32>, vector<1x128xf32> -> vector<10x128xf32>
    %5 = vector.extract_strided_slice %4 {offsets = [0, 0], sizes = [8, 128], strides = [1, 1]} : vector<10x128xf32> to vector<8x128xf32>
    %6 = vector.extract_strided_slice %4 {offsets = [1, 0], sizes = [8, 128], strides = [1, 1]} : vector<10x128xf32> to vector<8x128xf32>
    %7 = vector.extract_strided_slice %4 {offsets = [2, 0], sizes = [8, 128], strides = [1, 1]} : vector<10x128xf32> to vector<8x128xf32>
    %8 = tpu.concatenate %5, %6, %7 in 1 : vector<8x128xf32>, vector<8x128xf32>, vector<8x128xf32> -> vector<8x384xf32>
    %9 = vector.extract_strided_slice %1 {offsets = [8, 0], sizes = [8, 128], strides = [1, 1]} : vector<16x128xf32> to vector<8x128xf32>
    %cst_2 = arith.constant 0.000000e+00 : f32
    %10 = vector.broadcast %cst_2 : f32 to vector<1x128xf32>
    %11 = tpu.concatenate %10, %9, %10 in 0 : vector<1x128xf32>, vector<8x128xf32>, vector<1x128xf32> -> vector<10x128xf32>
    %12 = vector.extract_strided_slice %11 {offsets = [0, 0], sizes = [8, 128], strides = [1, 1]} : vector<10x128xf32> to vector<8x128xf32>
    %13 = vector.extract_strided_slice %11 {offsets = [1, 0], sizes = [8, 128], strides = [1, 1]} : vector<10x128xf32> to vector<8x128xf32>
    %14 = vector.extract_strided_slice %11 {offsets = [2, 0], sizes = [8, 128], strides = [1, 1]} : vector<10x128xf32> to vector<8x128xf32>
    %15 = tpu.concatenate %12, %13, %14 in 1 : vector<8x128xf32>, vector<8x128xf32>, vector<8x128xf32> -> vector<8x384xf32>
    %16 = tpu.concatenate %8, %15 in 0 : vector<8x384xf32>, vector<8x384xf32> -> vector<16x384xf32>
    %17 = arith.truncf %16 : vector<16x384xf32> to vector<16x384xbf16>
    %c0_3 = arith.constant 0 : index
    %c0_4 = arith.constant 0 : index
    %18 = vector.load %arg2[%c0_3, %c0_4] : memref<384x128xbf16, #tpu.memory_space<vmem>>, vector<384x128xbf16>
    %cst_5 = arith.constant dense<0.000000e+00> : vector<16x128xf32>
    %19 = tpu.matmul %17, %18, %cst_5 {dimension_numbers = #tpu.dot_dimension_numbers<[1], [0], [0], [1], [0, 0, 1, 1], [], []>} : vector<16x384xbf16>, vector<384x128xbf16>, vector<16x128xf32> -> vector<16x128xf32>
    %c0_6 = arith.constant 0 : index
    %c0_7 = arith.constant 0 : index
    %20 = vector.load %arg3[%c0_6, %c0_7] : memref<1x128xf32, #tpu.memory_space<vmem>>, vector<1x128xf32>
    %21 = vector.broadcast %20 : vector<1x128xf32> to vector<16x128xf32>
    %22 = arith.addf %19, %21 : vector<16x128xf32>
    %cst_8 = arith.constant 0.000000e+00 : f32
    %23 = vector.broadcast %cst_8 : f32 to vector<16x128xf32>
    %24 = arith.maximumf %22, %23 : vector<16x128xf32>
    %25 = vector.extract_strided_slice %24 {offsets = [0, 0], sizes = [8, 128], strides = [1, 1]} : vector<16x128xf32> to vector<8x128xf32>
    %cst_9 = arith.constant 0.000000e+00 : f32
    %26 = vector.broadcast %cst_9 : f32 to vector<1x128xf32>
    %27 = tpu.concatenate %26, %25, %26 in 0 : vector<1x128xf32>, vector<8x128xf32>, vector<1x128xf32> -> vector<10x128xf32>
    %28 = vector.extract_strided_slice %27 {offsets = [0, 0], sizes = [8, 128], strides = [1, 1]} : vector<10x128xf32> to vector<8x128xf32>
    %29 = vector.extract_strided_slice %27 {offsets = [1, 0], sizes = [8, 128], strides = [1, 1]} : vector<10x128xf32> to vector<8x128xf32>
    %30 = vector.extract_strided_slice %27 {offsets = [2, 0], sizes = [8, 128], strides = [1, 1]} : vector<10x128xf32> to vector<8x128xf32>
    %31 = tpu.concatenate %28, %29, %30 in 1 : vector<8x128xf32>, vector<8x128xf32>, vector<8x128xf32> -> vector<8x384xf32>
    %32 = vector.extract_strided_slice %24 {offsets = [8, 0], sizes = [8, 128], strides = [1, 1]} : vector<16x128xf32> to vector<8x128xf32>
    %cst_10 = arith.constant 0.000000e+00 : f32
    %33 = vector.broadcast %cst_10 : f32 to vector<1x128xf32>
    %34 = tpu.concatenate %33, %32, %33 in 0 : vector<1x128xf32>, vector<8x128xf32>, vector<1x128xf32> -> vector<10x128xf32>
    %35 = vector.extract_strided_slice %34 {offsets = [0, 0], sizes = [8, 128], strides = [1, 1]} : vector<10x128xf32> to vector<8x128xf32>
    %36 = vector.extract_strided_slice %34 {offsets = [1, 0], sizes = [8, 128], strides = [1, 1]} : vector<10x128xf32> to vector<8x128xf32>
    %37 = vector.extract_strided_slice %34 {offsets = [2, 0], sizes = [8, 128], strides = [1, 1]} : vector<10x128xf32> to vector<8x128xf32>
    %38 = tpu.concatenate %35, %36, %37 in 1 : vector<8x128xf32>, vector<8x128xf32>, vector<8x128xf32> -> vector<8x384xf32>
    %39 = tpu.concatenate %31, %38 in 0 : vector<8x384xf32>, vector<8x384xf32> -> vector<16x384xf32>
    %40 = arith.truncf %39 : vector<16x384xf32> to vector<16x384xbf16>
    %c0_11 = arith.constant 0 : index
    %c0_12 = arith.constant 0 : index
    %41 = vector.load %arg4[%c0_11, %c0_12] : memref<384x128xbf16, #tpu.memory_space<vmem>>, vector<384x128xbf16>
    %cst_13 = arith.constant dense<0.000000e+00> : vector<16x128xf32>
    %42 = tpu.matmul %40, %41, %cst_13 {dimension_numbers = #tpu.dot_dimension_numbers<[1], [0], [0], [1], [0, 0, 1, 1], [], []>} : vector<16x384xbf16>, vector<384x128xbf16>, vector<16x128xf32> -> vector<16x128xf32>
    %c0_14 = arith.constant 0 : index
    %c0_15 = arith.constant 0 : index
    %43 = vector.load %arg5[%c0_14, %c0_15] : memref<1x128xf32, #tpu.memory_space<vmem>>, vector<1x128xf32>
    %44 = vector.broadcast %43 : vector<1x128xf32> to vector<16x128xf32>
    %45 = arith.addf %42, %44 : vector<16x128xf32>
    %cst_16 = arith.constant 0.000000e+00 : f32
    %46 = vector.broadcast %cst_16 : f32 to vector<16x128xf32>
    %47 = arith.maximumf %45, %46 : vector<16x128xf32>
    %cst_17 = arith.constant dense<0.000000e+00> : vector<16xf32>
    %48 = vector.multi_reduction <add>, %47, %cst_17 [1] : vector<16x128xf32> to vector<16xf32>
    %49 = vector.shape_cast %48 : vector<16xf32> to vector<16x1xf32>
    %cst_18 = arith.constant 3.125000e-02 : f32
    %50 = vector.broadcast %cst_18 : f32 to vector<16x1xf32>
    %51 = arith.mulf %49, %50 : vector<16x1xf32>
    %52 = arith.mulf %47, %47 : vector<16x128xf32>
    %cst_19 = arith.constant dense<0.000000e+00> : vector<16xf32>
    %53 = vector.multi_reduction <add>, %52, %cst_19 [1] : vector<16x128xf32> to vector<16xf32>
    %54 = vector.shape_cast %53 : vector<16xf32> to vector<16x1xf32>
    %cst_20 = arith.constant 3.125000e-02 : f32
    %55 = vector.broadcast %cst_20 : f32 to vector<16x1xf32>
    %56 = arith.mulf %54, %55 : vector<16x1xf32>
    %57 = arith.mulf %51, %51 : vector<16x1xf32>
    %58 = arith.subf %56, %57 : vector<16x1xf32>
    %59 = vector.broadcast %51 : vector<16x1xf32> to vector<16x128xf32>
    %60 = arith.subf %47, %59 : vector<16x128xf32>
    %cst_21 = arith.constant 9.99999974E-6 : f32
    %61 = vector.broadcast %cst_21 : f32 to vector<16x1xf32>
    %62 = arith.addf %58, %61 : vector<16x1xf32>
    %63 = math.rsqrt %62 : vector<16x1xf32>
    %64 = vector.broadcast %63 : vector<16x1xf32> to vector<16x128xf32>
    %65 = arith.mulf %60, %64 : vector<16x128xf32>
    %c0_22 = arith.constant 0 : index
    %c0_23 = arith.constant 0 : index
    %66 = vector.load %arg6[%c0_22, %c0_23] : memref<1x128xf32, #tpu.memory_space<vmem>>, vector<1x128xf32>
    %67 = vector.broadcast %66 : vector<1x128xf32> to vector<16x128xf32>
    %68 = arith.mulf %65, %67 : vector<16x128xf32>
    %c0_24 = arith.constant 0 : index
    %c0_25 = arith.constant 0 : index
    %69 = vector.load %arg7[%c0_24, %c0_25] : memref<1x128xf32, #tpu.memory_space<vmem>>, vector<1x128xf32>
    %70 = vector.broadcast %69 : vector<1x128xf32> to vector<16x128xf32>
    %71 = arith.addf %68, %70 : vector<16x128xf32>
    %72 = vector.extract_strided_slice %71 {offsets = [0, 0], sizes = [8, 128], strides = [1, 1]} : vector<16x128xf32> to vector<8x128xf32>
    %cst_26 = arith.constant 0.000000e+00 : f32
    %73 = vector.broadcast %cst_26 : f32 to vector<1x128xf32>
    %74 = tpu.concatenate %73, %72, %73 in 0 : vector<1x128xf32>, vector<8x128xf32>, vector<1x128xf32> -> vector<10x128xf32>
    %75 = vector.extract_strided_slice %74 {offsets = [0, 0], sizes = [8, 128], strides = [1, 1]} : vector<10x128xf32> to vector<8x128xf32>
    %76 = vector.extract_strided_slice %74 {offsets = [1, 0], sizes = [8, 128], strides = [1, 1]} : vector<10x128xf32> to vector<8x128xf32>
    %77 = vector.extract_strided_slice %74 {offsets = [2, 0], sizes = [8, 128], strides = [1, 1]} : vector<10x128xf32> to vector<8x128xf32>
    %78 = tpu.concatenate %75, %76, %77 in 1 : vector<8x128xf32>, vector<8x128xf32>, vector<8x128xf32> -> vector<8x384xf32>
    %79 = vector.extract_strided_slice %71 {offsets = [8, 0], sizes = [8, 128], strides = [1, 1]} : vector<16x128xf32> to vector<8x128xf32>
    %cst_27 = arith.constant 0.000000e+00 : f32
    %80 = vector.broadcast %cst_27 : f32 to vector<1x128xf32>
    %81 = tpu.concatenate %80, %79, %80 in 0 : vector<1x128xf32>, vector<8x128xf32>, vector<1x128xf32> -> vector<10x128xf32>
    %82 = vector.extract_strided_slice %81 {offsets = [0, 0], sizes = [8, 128], strides = [1, 1]} : vector<10x128xf32> to vector<8x128xf32>
    %83 = vector.extract_strided_slice %81 {offsets = [1, 0], sizes = [8, 128], strides = [1, 1]} : vector<10x128xf32> to vector<8x128xf32>
    %84 = vector.extract_strided_slice %81 {offsets = [2, 0], sizes = [8, 128], strides = [1, 1]} : vector<10x128xf32> to vector<8x128xf32>
    %85 = tpu.concatenate %82, %83, %84 in 1 : vector<8x128xf32>, vector<8x128xf32>, vector<8x128xf32> -> vector<8x384xf32>
    %86 = tpu.concatenate %78, %85 in 0 : vector<8x384xf32>, vector<8x384xf32> -> vector<16x384xf32>
    %87 = arith.truncf %86 : vector<16x384xf32> to vector<16x384xbf16>
    %c0_28 = arith.constant 0 : index
    %c0_29 = arith.constant 0 : index
    %88 = vector.load %arg8[%c0_28, %c0_29] : memref<384x128xbf16, #tpu.memory_space<vmem>>, vector<384x128xbf16>
    %cst_30 = arith.constant dense<0.000000e+00> : vector<16x128xf32>
    %89 = tpu.matmul %87, %88, %cst_30 {dimension_numbers = #tpu.dot_dimension_numbers<[1], [0], [0], [1], [0, 0, 1, 1], [], []>} : vector<16x384xbf16>, vector<384x128xbf16>, vector<16x128xf32> -> vector<16x128xf32>
    %c0_31 = arith.constant 0 : index
    %c0_32 = arith.constant 0 : index
    %90 = vector.load %arg9[%c0_31, %c0_32] : memref<1x128xf32, #tpu.memory_space<vmem>>, vector<1x128xf32>
    %91 = vector.broadcast %90 : vector<1x128xf32> to vector<16x128xf32>
    %92 = arith.addf %89, %91 : vector<16x128xf32>
    %cst_33 = arith.constant 0.000000e+00 : f32
    %93 = vector.broadcast %cst_33 : f32 to vector<16x128xf32>
    %94 = arith.maximumf %92, %93 : vector<16x128xf32>
    %95 = vector.extract_strided_slice %94 {offsets = [0, 0], sizes = [8, 128], strides = [1, 1]} : vector<16x128xf32> to vector<8x128xf32>
    %cst_34 = arith.constant 0.000000e+00 : f32
    %96 = vector.broadcast %cst_34 : f32 to vector<1x128xf32>
    %97 = tpu.concatenate %96, %95, %96 in 0 : vector<1x128xf32>, vector<8x128xf32>, vector<1x128xf32> -> vector<10x128xf32>
    %98 = vector.extract_strided_slice %97 {offsets = [0, 0], sizes = [8, 128], strides = [1, 1]} : vector<10x128xf32> to vector<8x128xf32>
    %99 = vector.extract_strided_slice %97 {offsets = [1, 0], sizes = [8, 128], strides = [1, 1]} : vector<10x128xf32> to vector<8x128xf32>
    %100 = vector.extract_strided_slice %97 {offsets = [2, 0], sizes = [8, 128], strides = [1, 1]} : vector<10x128xf32> to vector<8x128xf32>
    %101 = tpu.concatenate %98, %99, %100 in 1 : vector<8x128xf32>, vector<8x128xf32>, vector<8x128xf32> -> vector<8x384xf32>
    %102 = vector.extract_strided_slice %94 {offsets = [8, 0], sizes = [8, 128], strides = [1, 1]} : vector<16x128xf32> to vector<8x128xf32>
    %cst_35 = arith.constant 0.000000e+00 : f32
    %103 = vector.broadcast %cst_35 : f32 to vector<1x128xf32>
    %104 = tpu.concatenate %103, %102, %103 in 0 : vector<1x128xf32>, vector<8x128xf32>, vector<1x128xf32> -> vector<10x128xf32>
    %105 = vector.extract_strided_slice %104 {offsets = [0, 0], sizes = [8, 128], strides = [1, 1]} : vector<10x128xf32> to vector<8x128xf32>
    %106 = vector.extract_strided_slice %104 {offsets = [1, 0], sizes = [8, 128], strides = [1, 1]} : vector<10x128xf32> to vector<8x128xf32>
    %107 = vector.extract_strided_slice %104 {offsets = [2, 0], sizes = [8, 128], strides = [1, 1]} : vector<10x128xf32> to vector<8x128xf32>
    %108 = tpu.concatenate %105, %106, %107 in 1 : vector<8x128xf32>, vector<8x128xf32>, vector<8x128xf32> -> vector<8x384xf32>
    %109 = tpu.concatenate %101, %108 in 0 : vector<8x384xf32>, vector<8x384xf32> -> vector<16x384xf32>
    %110 = arith.truncf %109 : vector<16x384xf32> to vector<16x384xbf16>
    %c0_36 = arith.constant 0 : index
    %c0_37 = arith.constant 0 : index
    %111 = vector.load %arg10[%c0_36, %c0_37] : memref<384x128xbf16, #tpu.memory_space<vmem>>, vector<384x128xbf16>
    %cst_38 = arith.constant dense<0.000000e+00> : vector<16x128xf32>
    %112 = tpu.matmul %110, %111, %cst_38 {dimension_numbers = #tpu.dot_dimension_numbers<[1], [0], [0], [1], [0, 0, 1, 1], [], []>} : vector<16x384xbf16>, vector<384x128xbf16>, vector<16x128xf32> -> vector<16x128xf32>
    %c0_39 = arith.constant 0 : index
    %c0_40 = arith.constant 0 : index
    %113 = vector.load %arg11[%c0_39, %c0_40] : memref<1x128xf32, #tpu.memory_space<vmem>>, vector<1x128xf32>
    %114 = vector.broadcast %113 : vector<1x128xf32> to vector<16x128xf32>
    %115 = arith.addf %112, %114 : vector<16x128xf32>
    %cst_41 = arith.constant 0.000000e+00 : f32
    %116 = vector.broadcast %cst_41 : f32 to vector<16x128xf32>
    %117 = arith.maximumf %115, %116 : vector<16x128xf32>
    %cst_42 = arith.constant dense<0.000000e+00> : vector<16xf32>
    %118 = vector.multi_reduction <add>, %117, %cst_42 [1] : vector<16x128xf32> to vector<16xf32>
    %119 = vector.shape_cast %118 : vector<16xf32> to vector<16x1xf32>
    %cst_43 = arith.constant 3.125000e-02 : f32
    %120 = vector.broadcast %cst_43 : f32 to vector<16x1xf32>
    %121 = arith.mulf %119, %120 : vector<16x1xf32>
    %122 = arith.mulf %117, %117 : vector<16x128xf32>
    %cst_44 = arith.constant dense<0.000000e+00> : vector<16xf32>
    %123 = vector.multi_reduction <add>, %122, %cst_44 [1] : vector<16x128xf32> to vector<16xf32>
    %124 = vector.shape_cast %123 : vector<16xf32> to vector<16x1xf32>
    %cst_45 = arith.constant 3.125000e-02 : f32
    %125 = vector.broadcast %cst_45 : f32 to vector<16x1xf32>
    %126 = arith.mulf %124, %125 : vector<16x1xf32>
    %127 = arith.mulf %121, %121 : vector<16x1xf32>
    %128 = arith.subf %126, %127 : vector<16x1xf32>
    %129 = vector.broadcast %121 : vector<16x1xf32> to vector<16x128xf32>
    %130 = arith.subf %117, %129 : vector<16x128xf32>
    %cst_46 = arith.constant 9.99999974E-6 : f32
    %131 = vector.broadcast %cst_46 : f32 to vector<16x1xf32>
    %132 = arith.addf %128, %131 : vector<16x1xf32>
    %133 = math.rsqrt %132 : vector<16x1xf32>
    %134 = vector.broadcast %133 : vector<16x1xf32> to vector<16x128xf32>
    %135 = arith.mulf %130, %134 : vector<16x128xf32>
    %c0_47 = arith.constant 0 : index
    %c0_48 = arith.constant 0 : index
    %136 = vector.load %arg12[%c0_47, %c0_48] : memref<1x128xf32, #tpu.memory_space<vmem>>, vector<1x128xf32>
    %137 = vector.broadcast %136 : vector<1x128xf32> to vector<16x128xf32>
    %138 = arith.mulf %135, %137 : vector<16x128xf32>
    %c0_49 = arith.constant 0 : index
    %c0_50 = arith.constant 0 : index
    %139 = vector.load %arg13[%c0_49, %c0_50] : memref<1x128xf32, #tpu.memory_space<vmem>>, vector<1x128xf32>
    %140 = vector.broadcast %139 : vector<1x128xf32> to vector<16x128xf32>
    %141 = arith.addf %138, %140 : vector<16x128xf32>
    %142 = arith.truncf %141 : vector<16x128xf32> to vector<16x128xbf16>
    %c0_51 = arith.constant 0 : index
    %c0_52 = arith.constant 0 : index
    %143 = vector.load %arg14[%c0_51, %c0_52] : memref<128x128xbf16, #tpu.memory_space<vmem>>, vector<128x128xbf16>
    %cst_53 = arith.constant dense<0.000000e+00> : vector<16x128xf32>
    %144 = tpu.matmul %142, %143, %cst_53 {dimension_numbers = #tpu.dot_dimension_numbers<[1], [0], [0], [1], [0, 0, 1, 1], [], []>} : vector<16x128xbf16>, vector<128x128xbf16>, vector<16x128xf32> -> vector<16x128xf32>
    %c0_54 = arith.constant 0 : index
    %c0_55 = arith.constant 0 : index
    %145 = vector.load %arg15[%c0_54, %c0_55] : memref<1x128xf32, #tpu.memory_space<vmem>>, vector<1x128xf32>
    %146 = vector.broadcast %145 : vector<1x128xf32> to vector<16x128xf32>
    %147 = arith.addf %144, %146 : vector<16x128xf32>
    %148 = vector.shape_cast %147 : vector<16x128xf32> to vector<2x8x128xf32>
    %c0_56 = arith.constant 0 : index
    %c0_57 = arith.constant 0 : index
    %c0_58 = arith.constant 0 : index
    %149 = vector.load %arg16[%c0_56, %c0_57, %c0_58] : memref<2x8x128xf32, #tpu.memory_space<vmem>>, vector<2x8x128xf32>
    tpu.vector_store %arg16[%c0_56, %c0_57, %c0_58], %148 {strides = array<i32>} : memref<2x8x128xf32, #tpu.memory_space<vmem>>, vector<2x8x128xf32>,
    return
  }
  func.func @transform_0(%arg0: i32) -> (i32, i32, i32) {
    %c0_i32 = arith.constant 0 : i32
    %c0_i32_0 = arith.constant 0 : i32
    %c0_i32_1 = arith.constant 0 : i32
    return %arg0, %c0_i32, %c0_i32_0 : i32, i32, i32
  }
  func.func @transform_1(%arg0: i32) -> (i32, i32) {
    %c0_i32 = arith.constant 0 : i32
    %c0_i32_0 = arith.constant 0 : i32
    %c0_i32_1 = arith.constant 0 : i32
    return %c0_i32, %c0_i32_0 : i32, i32
  }
  func.func @transform_2(%arg0: i32) -> (i32, i32) {
    %c0_i32 = arith.constant 0 : i32
    %c0_i32_0 = arith.constant 0 : i32
    %c0_i32_1 = arith.constant 0 : i32
    return %c0_i32, %c0_i32_0 : i32, i32
  }
  func.func @transform_3(%arg0: i32) -> (i32, i32) {
    %c0_i32 = arith.constant 0 : i32
    %c0_i32_0 = arith.constant 0 : i32
    %c0_i32_1 = arith.constant 0 : i32
    return %c0_i32, %c0_i32_0 : i32, i32
  }
  func.func @transform_4(%arg0: i32) -> (i32, i32) {
    %c0_i32 = arith.constant 0 : i32
    %c0_i32_0 = arith.constant 0 : i32
    %c0_i32_1 = arith.constant 0 : i32
    return %c0_i32, %c0_i32_0 : i32, i32
  }
  func.func @transform_5(%arg0: i32) -> (i32, i32) {
    %c0_i32 = arith.constant 0 : i32
    %c0_i32_0 = arith.constant 0 : i32
    %c0_i32_1 = arith.constant 0 : i32
    return %c0_i32, %c0_i32_0 : i32, i32
  }
  func.func @transform_6(%arg0: i32) -> (i32, i32) {
    %c0_i32 = arith.constant 0 : i32
    %c0_i32_0 = arith.constant 0 : i32
    %c0_i32_1 = arith.constant 0 : i32
    return %c0_i32, %c0_i32_0 : i32, i32
  }
  func.func @transform_7(%arg0: i32) -> (i32, i32) {
    %c0_i32 = arith.constant 0 : i32
    %c0_i32_0 = arith.constant 0 : i32
    %c0_i32_1 = arith.constant 0 : i32
    return %c0_i32, %c0_i32_0 : i32, i32
  }
  func.func @transform_8(%arg0: i32) -> (i32, i32) {
    %c0_i32 = arith.constant 0 : i32
    %c0_i32_0 = arith.constant 0 : i32
    %c0_i32_1 = arith.constant 0 : i32
    return %c0_i32, %c0_i32_0 : i32, i32
  }
  func.func @transform_9(%arg0: i32) -> (i32, i32) {
    %c0_i32 = arith.constant 0 : i32
    %c0_i32_0 = arith.constant 0 : i32
    %c0_i32_1 = arith.constant 0 : i32
    return %c0_i32, %c0_i32_0 : i32, i32
  }
  func.func @transform_10(%arg0: i32) -> (i32, i32) {
    %c0_i32 = arith.constant 0 : i32
    %c0_i32_0 = arith.constant 0 : i32
    %c0_i32_1 = arith.constant 0 : i32
    return %c0_i32, %c0_i32_0 : i32, i32
  }
  func.func @transform_11(%arg0: i32) -> (i32, i32) {
    %c0_i32 = arith.constant 0 : i32
    %c0_i32_0 = arith.constant 0 : i32
    %c0_i32_1 = arith.constant 0 : i32
    return %c0_i32, %c0_i32_0 : i32, i32
  }
  func.func @transform_12(%arg0: i32) -> (i32, i32) {
    %c0_i32 = arith.constant 0 : i32
    %c0_i32_0 = arith.constant 0 : i32
    %c0_i32_1 = arith.constant 0 : i32
    return %c0_i32, %c0_i32_0 : i32, i32
  }
  func.func @transform_13(%arg0: i32) -> (i32, i32) {
    %c0_i32 = arith.constant 0 : i32
    %c0_i32_0 = arith.constant 0 : i32
    %c0_i32_1 = arith.constant 0 : i32
    return %c0_i32, %c0_i32_0 : i32, i32
  }
  func.func @transform_14(%arg0: i32) -> (i32, i32) {
    %c0_i32 = arith.constant 0 : i32
    %c0_i32_0 = arith.constant 0 : i32
    %c0_i32_1 = arith.constant 0 : i32
    return %c0_i32, %c0_i32_0 : i32, i32
  }
  func.func @transform_15(%arg0: i32) -> (i32, i32, i32) {
    %c0_i32 = arith.constant 0 : i32
    %c0_i32_0 = arith.constant 0 : i32
    %c0_i32_1 = arith.constant 0 : i32
    return %arg0, %c0_i32, %c0_i32_0 : i32, i32, i32
  }
}

</mosaic_0001>

<llo_original>
// kernel: tpu_custom_call.1
$region0: #{tpu_custom_call.1}
  #allocation0 [shape = 'u32[]', space=smem, size = 0x4, offset = 0x4, fixed_abs, tag = 'smem constant byte address 0x4 - core index']
  #allocation1 [shape = 'u32[144,128]{1,0:T(1,128)}', space=vmem, size = 0x12000, scoped, tag = 'internal scratch']
  %s0 = inlined_call_operand.hbm [shape: f32[4,8,128], index: 0, kind: input, shape index: {}]
  %s1 = inlined_call_operand.hbm [shape: bf16[384,128], index: 1, kind: input, shape index: {}]
  %s2 = inlined_call_operand.vmem [shape: f32[1,128], index: 2, kind: input, shape index: {}]
  %s3 = inlined_call_operand.hbm [shape: bf16[384,128], index: 3, kind: input, shape index: {}]
  %s4 = inlined_call_operand.vmem [shape: f32[1,128], index: 4, kind: input, shape index: {}]
  %s5 = inlined_call_operand.vmem [shape: f32[1,128], index: 5, kind: input, shape index: {}]
  %s6 = inlined_call_operand.vmem [shape: f32[1,128], index: 6, kind: input, shape index: {}]
  %s7 = inlined_call_operand.hbm [shape: bf16[384,128], index: 7, kind: input, shape index: {}]
  %s8 = inlined_call_operand.vmem [shape: f32[1,128], index: 8, kind: input, shape index: {}]
  %s9 = inlined_call_operand.hbm [shape: bf16[384,128], index: 9, kind: input, shape index: {}]
  %s10 = inlined_call_operand.vmem [shape: f32[1,128], index: 10, kind: input, shape index: {}]
  %s11 = inlined_call_operand.vmem [shape: f32[1,128], index: 11, kind: input, shape index: {}]
  %s12 = inlined_call_operand.vmem [shape: f32[1,128], index: 12, kind: input, shape index: {}]
  %s13 = inlined_call_operand.hbm [shape: bf16[128,128], index: 13, kind: input, shape index: {}]
  %s14 = inlined_call_operand.vmem [shape: f32[1,128], index: 14, kind: input, shape index: {}]
  %s15 = inlined_call_operand.hbm [shape: f32[4,8,128], index: 15, kind: output, shape index: {}]
  %s16 = sld [smem:[#allocation0]]
  $region117: #{tpu_custom_call.1} parent=0
    _
  %s18 = ssub.s32 1, %s16
  %s19 = scalar_select 0, %s18, %s16
  $region1: #{tpu_custom_call.1} parent=0
    #allocation2 [shape = 'u8[16384]{0}', space=vmem, size = 0x4000, scoped, tag = 'input window, operand 0']
    #allocation3 [shape = 's32[2]{0}', space=sflag, size = 0x8, scoped, tag = 'scoped memory for tpu_custom_call.1']
    #allocation4 [shape = 's32[2]{0}', space=sflag, size = 0x8, scoped, tag = 'scoped memory for tpu_custom_call.1']
    #allocation5 [shape = 'u8[98304]{0}', space=vmem, size = 0x18000, scoped, tag = 'input window, operand 1, single buffered']
    #allocation6 [shape = 's32[1]{0}', space=sflag, size = 0x4, scoped, tag = 'scoped memory for tpu_custom_call.1']
    #allocation7 [shape = 'u8[98304]{0}', space=vmem, size = 0x18000, scoped, tag = 'input window, operand 3, single buffered']
    #allocation8 [shape = 'u8[98304]{0}', space=vmem, size = 0x18000, scoped, tag = 'input window, operand 7, single buffered']
    #allocation9 [shape = 's32[1]{0}', space=sflag, size = 0x4, scoped, tag = 'scoped memory for tpu_custom_call.1']
    #allocation10 [shape = 'u8[98304]{0}', space=vmem, size = 0x18000, scoped, tag = 'input window, operand 9, single buffered']
    #allocation11 [shape = 'u8[32768]{0}', space=vmem, size = 0x8000, scoped, tag = 'input window, operand 13, single buffered']
    #allocation12 [shape = 's32[1]{0}', space=sflag, size = 0x4, scoped, tag = 'scoped memory for tpu_custom_call.1']
    #allocation13 [shape = 'u8[16384]{0}', space=vmem, size = 0x4000, scoped, tag = 'output window, operand 0']
    %20 = vsyncpa [#allocation3], 0
    %s21 = scalar_lea.sflag [#allocation3], 1
    %22 = vsyncpa %s21, 0
    %23 = vsyncpa [#allocation6], 0
    %24 = vsyncpa [#allocation9], 0
    %25 = vsyncpa [#allocation12], 0
    %26 = vsyncpa [#allocation4], 0
    %s27 = scalar_lea.sflag [#allocation4], 1
    %28 = vsyncpa %s27, 0
    loop: start=0, step=1, limit=4
    $region2: #{tpu_custom_call.1} parent=1 // loop_pre_header
      _
    $region3: #{tpu_custom_call.1} parent=1 // loop_header
      %s30 = sphi 0, %s34
      %p31 = scmp.ge.s32.totalorder %s30, 4
      %s40 = sphi 0, %s42
      %s43 = sphi 0, %s40
      %s44 = sphi 0, %s43
      %s60 = sphi 0, %s44
      %s64 = sphi 0, %s64
      %s66 = sphi 0, %s64
      %s67 = sphi 0, %s66
      %s81 = sphi 0, %s67
      %s85 = sphi 0, %s85
      %s87 = sphi 0, %s85
      %s88 = sphi 0, %s87
      %s102 = sphi 0, %s88
      %s106 = sphi 0, %s106
      %s108 = sphi 0, %s106
      %s109 = sphi 0, %s108
      %s123 = sphi 0, %s109
      %s127 = sphi 0, %s127
      %s129 = sphi 0, %s127
      %s130 = sphi 0, %s129
      %s144 = sphi 0, %s130
      %s148 = sphi 0, %s148
      %s150 = sphi 0, %s148
      %s151 = sphi 0, %s150
      %s165 = sphi 0, %s151
      %s169 = sphi 0, %s169
      %s171 = sphi 0, %s169
      %s172 = sphi 0, %s171
      %s186 = sphi 0, %s172
      %s190 = sphi 0, %s190
      %s192 = sphi 0, %s190
      %s193 = sphi 0, %s192
      %s207 = sphi 0, %s193
      %s211 = sphi 0, %s211
      %s213 = sphi 0, %s211
      %s214 = sphi 0, %s213
      %s228 = sphi 0, %s214
      %s232 = sphi 0, %s232
      %s234 = sphi 0, %s232
      %s235 = sphi 0, %s234
      %s249 = sphi 0, %s235
      %s253 = sphi 0, %s253
      %s255 = sphi 0, %s253
      %s256 = sphi 0, %s255
      %s270 = sphi 0, %s256
      %s274 = sphi 0, %s274
      %s276 = sphi 0, %s274
      %s277 = sphi 0, %s276
      %s291 = sphi 0, %s277
      %s295 = sphi 0, %s295
      %s297 = sphi 0, %s295
      %s298 = sphi 0, %s297
      %s312 = sphi 0, %s298
      %s316 = sphi 0, %s316
      %s318 = sphi 0, %s316
      %s319 = sphi 0, %s318
      %s333 = sphi 0, %s319
      %s337 = sphi 0, %s337
      %s339 = sphi 0, %s337
      %s340 = sphi 0, %s339
      %s354 = sphi 0, %s340
      %s360 = sphi 0, %s362
      %s363 = sphi 0, %s360
      %s364 = sphi 0, %s363
      %s380 = sphi 0, %s364
    $region4: #{tpu_custom_call.1} parent=1 // loop_header_branch
      %33 = sbr.rel (%p31) target = $region8
    $region5: #{tpu_custom_call.1} parent=1 // loop_body
      %s35 = ssub.s32 %s30, 1
      %s36 = ssub.s32 %s30, 2
      %s37 = sadd.s32 %s30, 1
      %s38 = ssub.s32 %s30, %s37
      %p39 = scmp.eq.s32.totalorder %s38, 0
      %s41 = sadd.s32 %s40, 1
      %s42 = scalar_select %p39, %s40, %s41
      %p45 = pneg %p39
      %p46 = scmp.eq.s32.totalorder %s30, 1
      %p47 = por %p45, %p46
      %p48 = scmp.ne.s32.totalorder %s40, %s43
      %p49 = scmp.eq.s32.totalorder %s30, 0
      %p50 = por %p48, %p49
      %p51 = scmp.ne.s32.totalorder %s40, %s43
      %p52 = scmp.eq.s32.totalorder %s35, 1
      %p53 = por %p51, %p52
      %p54 = scmp.ne.s32.totalorder %s43, %s44
      %p55 = scmp.eq.s32.totalorder %s35, 0
      %p56 = por %p54, %p55
      %p57 = scmp.ne.s32.totalorder %s43, %s44
      %p58 = scmp.eq.s32.totalorder %s36, 1
      %p59 = por %p57, %p58
      %p61 = scmp.ne.s32.totalorder %s44, %s60
      %p62 = scmp.eq.s32.totalorder %s36, 0
      %p63 = por %p61, %p62
      %s65 = sadd.s32 %s64, 1
      %p68 = scmp.eq.s32.totalorder %s30, 1
      %p69 = scmp.ne.s32.totalorder %s64, %s66
      %p70 = scmp.eq.s32.totalorder %s30, 0
      %p71 = por %p69, %p70
      %p72 = scmp.ne.s32.totalorder %s64, %s66
      %p73 = scmp.eq.s32.totalorder %s35, 1
      %p74 = por %p72, %p73
      %p75 = scmp.ne.s32.totalorder %s66, %s67
      %p76 = scmp.eq.s32.totalorder %s35, 0
      %p77 = por %p75, %p76
      %p78 = scmp.ne.s32.totalorder %s66, %s67
      %p79 = scmp.eq.s32.totalorder %s36, 1
      %p80 = por %p78, %p79
      %p82 = scmp.ne.s32.totalorder %s67, %s81
      %p83 = scmp.eq.s32.totalorder %s36, 0
      %p84 = por %p82, %p83
      %s86 = sadd.s32 %s85, 1
      %p89 = scmp.eq.s32.totalorder %s30, 1
      %p90 = scmp.ne.s32.totalorder %s85, %s87
      %p91 = scmp.eq.s32.totalorder %s30, 0
      %p92 = por %p90, %p91
      %p93 = scmp.ne.s32.totalorder %s85, %s87
      %p94 = scmp.eq.s32.totalorder %s35, 1
      %p95 = por %p93, %p94
      %p96 = scmp.ne.s32.totalorder %s87, %s88
      %p97 = scmp.eq.s32.totalorder %s35, 0
      %p98 = por %p96, %p97
      %p99 = scmp.ne.s32.totalorder %s87, %s88
      %p100 = scmp.eq.s32.totalorder %s36, 1
      %p101 = por %p99, %p100
      %p103 = scmp.ne.s32.totalorder %s88, %s102
      %p104 = scmp.eq.s32.totalorder %s36, 0
      %p105 = por %p103, %p104
      %s107 = sadd.s32 %s106, 1
      %p110 = scmp.eq.s32.totalorder %s30, 1
      %p111 = scmp.ne.s32.totalorder %s106, %s108
      %p112 = scmp.eq.s32.totalorder %s30, 0
      %p113 = por %p111, %p112
      %p114 = scmp.ne.s32.totalorder %s106, %s108
      %p115 = scmp.eq.s32.totalorder %s35, 1
      %p116 = por %p114, %p115
      %p117 = scmp.ne.s32.totalorder %s108, %s109
      %p118 = scmp.eq.s32.totalorder %s35, 0
      %p119 = por %p117, %p118
      %p120 = scmp.ne.s32.totalorder %s108, %s109
      %p121 = scmp.eq.s32.totalorder %s36, 1
      %p122 = por %p120, %p121
      %p124 = scmp.ne.s32.totalorder %s109, %s123
      %p125 = scmp.eq.s32.totalorder %s36, 0
      %p126 = por %p124, %p125
      %s128 = sadd.s32 %s127, 1
      %p131 = scmp.eq.s32.totalorder %s30, 1
      %p132 = scmp.ne.s32.totalorder %s127, %s129
      %p133 = scmp.eq.s32.totalorder %s30, 0
      %p134 = por %p132, %p133
      %p135 = scmp.ne.s32.totalorder %s127, %s129
      %p136 = scmp.eq.s32.totalorder %s35, 1
      %p137 = por %p135, %p136
      %p138 = scmp.ne.s32.totalorder %s129, %s130
      %p139 = scmp.eq.s32.totalorder %s35, 0
      %p140 = por %p138, %p139
      %p141 = scmp.ne.s32.totalorder %s129, %s130
      %p142 = scmp.eq.s32.totalorder %s36, 1
      %p143 = por %p141, %p142
      %p145 = scmp.ne.s32.totalorder %s130, %s144
      %p146 = scmp.eq.s32.totalorder %s36, 0
      %p147 = por %p145, %p146
      %s149 = sadd.s32 %s148, 1
      %p152 = scmp.eq.s32.totalorder %s30, 1
      %p153 = scmp.ne.s32.totalorder %s148, %s150
      %p154 = scmp.eq.s32.totalorder %s30, 0
      %p155 = por %p153, %p154
      %p156 = scmp.ne.s32.totalorder %s148, %s150
      %p157 = scmp.eq.s32.totalorder %s35, 1
      %p158 = por %p156, %p157
      %p159 = scmp.ne.s32.totalorder %s150, %s151
      %p160 = scmp.eq.s32.totalorder %s35, 0
      %p161 = por %p159, %p160
      %p162 = scmp.ne.s32.totalorder %s150, %s151
      %p163 = scmp.eq.s32.totalorder %s36, 1
      %p164 = por %p162, %p163
      %p166 = scmp.ne.s32.totalorder %s151, %s165
      %p167 = scmp.eq.s32.totalorder %s36, 0
      %p168 = por %p166, %p167
      %s170 = sadd.s32 %s169, 1
      %p173 = scmp.eq.s32.totalorder %s30, 1
      %p174 = scmp.ne.s32.totalorder %s169, %s171
      %p175 = scmp.eq.s32.totalorder %s30, 0
      %p176 = por %p174, %p175
      %p177 = scmp.ne.s32.totalorder %s169, %s171
      %p178 = scmp.eq.s32.totalorder %s35, 1
      %p179 = por %p177, %p178
      %p180 = scmp.ne.s32.totalorder %s171, %s172
      %p181 = scmp.eq.s32.totalorder %s35, 0
      %p182 = por %p180, %p181
      %p183 = scmp.ne.s32.totalorder %s171, %s172
      %p184 = scmp.eq.s32.totalorder %s36, 1
      %p185 = por %p183, %p184
      %p187 = scmp.ne.s32.totalorder %s172, %s186
      %p188 = scmp.eq.s32.totalorder %s36, 0
      %p189 = por %p187, %p188
      %s191 = sadd.s32 %s190, 1
      %p194 = scmp.eq.s32.totalorder %s30, 1
      %p195 = scmp.ne.s32.totalorder %s190, %s192
      %p196 = scmp.eq.s32.totalorder %s30, 0
      %p197 = por %p195, %p196
      %p198 = scmp.ne.s32.totalorder %s190, %s192
      %p199 = scmp.eq.s32.totalorder %s35, 1
      %p200 = por %p198, %p199
      %p201 = scmp.ne.s32.totalorder %s192, %s193
      %p202 = scmp.eq.s32.totalorder %s35, 0
      %p203 = por %p201, %p202
      %p204 = scmp.ne.s32.totalorder %s192, %s193
      %p205 = scmp.eq.s32.totalorder %s36, 1
      %p206 = por %p204, %p205
      %p208 = scmp.ne.s32.totalorder %s193, %s207
      %p209 = scmp.eq.s32.totalorder %s36, 0
      %p210 = por %p208, %p209
      %s212 = sadd.s32 %s211, 1
      %p215 = scmp.eq.s32.totalorder %s30, 1
      %p216 = scmp.ne.s32.totalorder %s211, %s213
      %p217 = scmp.eq.s32.totalorder %s30, 0
      %p218 = por %p216, %p217
      %p219 = scmp.ne.s32.totalorder %s211, %s213
      %p220 = scmp.eq.s32.totalorder %s35, 1
      %p221 = por %p219, %p220
      %p222 = scmp.ne.s32.totalorder %s213, %s214
      %p223 = scmp.eq.s32.totalorder %s35, 0
      %p224 = por %p222, %p223
      %p225 = scmp.ne.s32.totalorder %s213, %s214
      %p226 = scmp.eq.s32.totalorder %s36, 1
      %p227 = por %p225, %p226
      %p229 = scmp.ne.s32.totalorder %s214, %s228
      %p230 = scmp.eq.s32.totalorder %s36, 0
      %p231 = por %p229, %p230
      %s233 = sadd.s32 %s232, 1
      %p236 = scmp.eq.s32.totalorder %s30, 1
      %p237 = scmp.ne.s32.totalorder %s232, %s234
      %p238 = scmp.eq.s32.totalorder %s30, 0
      %p239 = por %p237, %p238
      %p240 = scmp.ne.s32.totalorder %s232, %s234
      %p241 = scmp.eq.s32.totalorder %s35, 1
      %p242 = por %p240, %p241
      %p243 = scmp.ne.s32.totalorder %s234, %s235
      %p244 = scmp.eq.s32.totalorder %s35, 0
      %p245 = por %p243, %p244
      %p246 = scmp.ne.s32.totalorder %s234, %s235
      %p247 = scmp.eq.s32.totalorder %s36, 1
      %p248 = por %p246, %p247
      %p250 = scmp.ne.s32.totalorder %s235, %s249
      %p251 = scmp.eq.s32.totalorder %s36, 0
      %p252 = por %p250, %p251
      %s254 = sadd.s32 %s253, 1
      %p257 = scmp.eq.s32.totalorder %s30, 1
      %p258 = scmp.ne.s32.totalorder %s253, %s255
      %p259 = scmp.eq.s32.totalorder %s30, 0
      %p260 = por %p258, %p259
      %p261 = scmp.ne.s32.totalorder %s253, %s255
      %p262 = scmp.eq.s32.totalorder %s35, 1
      %p263 = por %p261, %p262
      %p264 = scmp.ne.s32.totalorder %s255, %s256
      %p265 = scmp.eq.s32.totalorder %s35, 0
      %p266 = por %p264, %p265
      %p267 = scmp.ne.s32.totalorder %s255, %s256
      %p268 = scmp.eq.s32.totalorder %s36, 1
      %p269 = por %p267, %p268
      %p271 = scmp.ne.s32.totalorder %s256, %s270
      %p272 = scmp.eq.s32.totalorder %s36, 0
      %p273 = por %p271, %p272
      %s275 = sadd.s32 %s274, 1
      %p278 = scmp.eq.s32.totalorder %s30, 1
      %p279 = scmp.ne.s32.totalorder %s274, %s276
      %p280 = scmp.eq.s32.totalorder %s30, 0
      %p281 = por %p279, %p280
      %p282 = scmp.ne.s32.totalorder %s274, %s276
      %p283 = scmp.eq.s32.totalorder %s35, 1
      %p284 = por %p282, %p283
      %p285 = scmp.ne.s32.totalorder %s276, %s277
      %p286 = scmp.eq.s32.totalorder %s35, 0
      %p287 = por %p285, %p286
      %p288 = scmp.ne.s32.totalorder %s276, %s277
      %p289 = scmp.eq.s32.totalorder %s36, 1
      %p290 = por %p288, %p289
      %p292 = scmp.ne.s32.totalorder %s277, %s291
      %p293 = scmp.eq.s32.totalorder %s36, 0
      %p294 = por %p292, %p293
      %s296 = sadd.s32 %s295, 1
      %p299 = scmp.eq.s32.totalorder %s30, 1
      %p300 = scmp.ne.s32.totalorder %s295, %s297
      %p301 = scmp.eq.s32.totalorder %s30, 0
      %p302 = por %p300, %p301
      %p303 = scmp.ne.s32.totalorder %s295, %s297
      %p304 = scmp.eq.s32.totalorder %s35, 1
      %p305 = por %p303, %p304
      %p306 = scmp.ne.s32.totalorder %s297, %s298
      %p307 = scmp.eq.s32.totalorder %s35, 0
      %p308 = por %p306, %p307
      %p309 = scmp.ne.s32.totalorder %s297, %s298
      %p310 = scmp.eq.s32.totalorder %s36, 1
      %p311 = por %p309, %p310
      %p313 = scmp.ne.s32.totalorder %s298, %s312
      %p314 = scmp.eq.s32.totalorder %s36, 0
      %p315 = por %p313, %p314
      %s317 = sadd.s32 %s316, 1
      %p320 = scmp.eq.s32.totalorder %s30, 1
      %p321 = scmp.ne.s32.totalorder %s316, %s318
      %p322 = scmp.eq.s32.totalorder %s30, 0
      %p323 = por %p321, %p322
      %p324 = scmp.ne.s32.totalorder %s316, %s318
      %p325 = scmp.eq.s32.totalorder %s35, 1
      %p326 = por %p324, %p325
      %p327 = scmp.ne.s32.totalorder %s318, %s319
      %p328 = scmp.eq.s32.totalorder %s35, 0
      %p329 = por %p327, %p328
      %p330 = scmp.ne.s32.totalorder %s318, %s319
      %p331 = scmp.eq.s32.totalorder %s36, 1
      %p332 = por %p330, %p331
      %p334 = scmp.ne.s32.totalorder %s319, %s333
      %p335 = scmp.eq.s32.totalorder %s36, 0
      %p336 = por %p334, %p335
      %s338 = sadd.s32 %s337, 1
      %p341 = scmp.eq.s32.totalorder %s30, 1
      %p342 = scmp.ne.s32.totalorder %s337, %s339
      %p343 = scmp.eq.s32.totalorder %s30, 0
      %p344 = por %p342, %p343
      %p345 = scmp.ne.s32.totalorder %s337, %s339
      %p346 = scmp.eq.s32.totalorder %s35, 1
      %p347 = por %p345, %p346
      %p348 = scmp.ne.s32.totalorder %s339, %s340
      %p349 = scmp.eq.s32.totalorder %s35, 0
      %p350 = por %p348, %p349
      %p351 = scmp.ne.s32.totalorder %s339, %s340
      %p352 = scmp.eq.s32.totalorder %s36, 1
      %p353 = por %p351, %p352
      %p355 = scmp.ne.s32.totalorder %s340, %s354
      %p356 = scmp.eq.s32.totalorder %s36, 0
      %p357 = por %p355, %p356
      %s358 = ssub.s32 %s30, %s37
      %p359 = scmp.eq.s32.totalorder %s358, 0
      %s361 = sadd.s32 %s360, 1
      %s362 = scalar_select %p359, %s360, %s361
      %p365 = pneg %p359
      %p366 = scmp.eq.s32.totalorder %s30, 1
      %p367 = por %p365, %p366
      %p368 = scmp.ne.s32.totalorder %s360, %s363
      %p369 = scmp.eq.s32.totalorder %s30, 0
      %p370 = por %p368, %p369
      %p371 = scmp.ne.s32.totalorder %s360, %s363
      %p372 = scmp.eq.s32.totalorder %s35, 1
      %p373 = por %p371, %p372
      %p374 = scmp.ne.s32.totalorder %s363, %s364
      %p375 = scmp.eq.s32.totalorder %s35, 0
      %p376 = por %p374, %p375
      %p377 = scmp.ne.s32.totalorder %s363, %s364
      %p378 = scmp.eq.s32.totalorder %s36, 1
      %p379 = por %p377, %p378
      %p381 = scmp.ne.s32.totalorder %s364, %s380
      %p382 = scmp.eq.s32.totalorder %s36, 0
      %p383 = por %p381, %p382
      %p384 = scmp.le.s32.totalorder 1, %s30
      %p385 = scmp.lt.s32.totalorder %s30, 3
      %p386 = pnand %p384, %p385
      %p387 = pneg %p386
      // Predicated region
      $region9: #{tpu_custom_call.1} parent=5 // pred_check
        _
      $region10: #{tpu_custom_call.1} parent=5 // pred_check_branch
        %389 = sbr.rel (%p386) target = $region12
      $region11: #{tpu_custom_call.1} parent=5 // pred_region
        %s390 = ssub.s32 %s30, 1
        // Predicated region
        $region13: #{tpu_custom_call.1} parent=11 // pred_check
          %p391 = pneg %p77
        $region14: #{tpu_custom_call.1} parent=11 // pred_check_branch
          %393 = sbr.rel (%p391) target = $region16
        $region15: #{tpu_custom_call.1} parent=11 // pred_region
          %s395 = ssub.s32 3072, 3072
          %396 = vsyncadd [#allocation6], %s395
          %s397 = sshll.u32 [#allocation5], 4
          %s398 = int_to_ptr.vmem [resolvable:$true] %s397
          %403 = dma.hbm_to_vmem [thread:$0]  %s1, 3072, %s398, [#allocation6], 64, 64, 4
        $region16: #{tpu_custom_call.1} parent=11 // pred_fallthru
          _
        // Predicated region
        $region17: #{tpu_custom_call.1} parent=11 // pred_check
          %p404 = pneg %p98
        $region18: #{tpu_custom_call.1} parent=11 // pred_check_branch
          %406 = sbr.rel (%p404) target = $region20
        $region19: #{tpu_custom_call.1} parent=11 // pred_region
          _
        $region20: #{tpu_custom_call.1} parent=11 // pred_fallthru
          _
        // Predicated region
        $region21: #{tpu_custom_call.1} parent=11 // pred_check
          %p407 = pneg %p119
        $region22: #{tpu_custom_call.1} parent=11 // pred_check_branch
          %409 = sbr.rel (%p407) target = $region24
        $region23: #{tpu_custom_call.1} parent=11 // pred_region
          %s411 = ssub.s32 3072, 3072
          %412 = vsyncadd [#allocation6], %s411
          %s413 = sshll.u32 [#allocation7], 4
          %s414 = int_to_ptr.vmem [resolvable:$true] %s413
          %419 = dma.hbm_to_vmem [thread:$0]  %s3, 3072, %s414, [#allocation6], 64, 64, 4
        $region24: #{tpu_custom_call.1} parent=11 // pred_fallthru
          _
        // Predicated region
        $region25: #{tpu_custom_call.1} parent=11 // pred_check
          %p420 = pneg %p140
        $region26: #{tpu_custom_call.1} parent=11 // pred_check_branch
          %422 = sbr.rel (%p420) target = $region28
        $region27: #{tpu_custom_call.1} parent=11 // pred_region
          _
        $region28: #{tpu_custom_call.1} parent=11 // pred_fallthru
          _
        // Predicated region
        $region29: #{tpu_custom_call.1} parent=11 // pred_check
          %p423 = pneg %p161
        $region30: #{tpu_custom_call.1} parent=11 // pred_check_branch
          %425 = sbr.rel (%p423) target = $region32
        $region31: #{tpu_custom_call.1} parent=11 // pred_region
          _
        $region32: #{tpu_custom_call.1} parent=11 // pred_fallthru
          _
        // Predicated region
        $region33: #{tpu_custom_call.1} parent=11 // pred_check
          %p426 = pneg %p182
        $region34: #{tpu_custom_call.1} parent=11 // pred_check_branch
          %428 = sbr.rel (%p426) target = $region36
        $region35: #{tpu_custom_call.1} parent=11 // pred_region
          _
        $region36: #{tpu_custom_call.1} parent=11 // pred_fallthru
          _
        // Predicated region
        $region37: #{tpu_custom_call.1} parent=11 // pred_check
          %p429 = pneg %p203
        $region38: #{tpu_custom_call.1} parent=11 // pred_check_branch
          %431 = sbr.rel (%p429) target = $region40
        $region39: #{tpu_custom_call.1} parent=11 // pred_region
          %s433 = ssub.s32 3072, 3072
          %434 = vsyncadd [#allocation9], %s433
          %s435 = sshll.u32 [#allocation8], 4
          %s436 = int_to_ptr.vmem [resolvable:$true] %s435
          %441 = dma.hbm_to_vmem [thread:$0]  %s7, 3072, %s436, [#allocation9], 64, 64, 4
        $region40: #{tpu_custom_call.1} parent=11 // pred_fallthru
          _
        // Predicated region
        $region41: #{tpu_custom_call.1} parent=11 // pred_check
          %p442 = pneg %p224
        $region42: #{tpu_custom_call.1} parent=11 // pred_check_branch
          %444 = sbr.rel (%p442) target = $region44
        $region43: #{tpu_custom_call.1} parent=11 // pred_region
          _
        $region44: #{tpu_custom_call.1} parent=11 // pred_fallthru
          _
        // Predicated region
        $region45: #{tpu_custom_call.1} parent=11 // pred_check
          %p445 = pneg %p245
        $region46: #{tpu_custom_call.1} parent=11 // pred_check_branch
          %447 = sbr.rel (%p445) target = $region48
        $region47: #{tpu_custom_call.1} parent=11 // pred_region
          %s449 = ssub.s32 3072, 3072
          %450 = vsyncadd [#allocation9], %s449
          %s451 = sshll.u32 [#allocation10], 4
          %s452 = int_to_ptr.vmem [resolvable:$true] %s451
          %457 = dma.hbm_to_vmem [thread:$0]  %s9, 3072, %s452, [#allocation9], 64, 64, 4
        $region48: #{tpu_custom_call.1} parent=11 // pred_fallthru
          _
        // Predicated region
        $region49: #{tpu_custom_call.1} parent=11 // pred_check
          %p458 = pneg %p266
        $region50: #{tpu_custom_call.1} parent=11 // pred_check_branch
          %460 = sbr.rel (%p458) target = $region52
        $region51: #{tpu_custom_call.1} parent=11 // pred_region
          _
        $region52: #{tpu_custom_call.1} parent=11 // pred_fallthru
          _
        // Predicated region
        $region53: #{tpu_custom_call.1} parent=11 // pred_check
          %p461 = pneg %p287
        $region54: #{tpu_custom_call.1} parent=11 // pred_check_branch
          %463 = sbr.rel (%p461) target = $region56
        $region55: #{tpu_custom_call.1} parent=11 // pred_region
          _
        $region56: #{tpu_custom_call.1} parent=11 // pred_fallthru
          _
        // Predicated region
        $region57: #{tpu_custom_call.1} parent=11 // pred_check
          %p464 = pneg %p308
        $region58: #{tpu_custom_call.1} parent=11 // pred_check_branch
          %466 = sbr.rel (%p464) target = $region60
        $region59: #{tpu_custom_call.1} parent=11 // pred_region
          _
        $region60: #{tpu_custom_call.1} parent=11 // pred_fallthru
          _
        // Predicated region
        $region61: #{tpu_custom_call.1} parent=11 // pred_check
          %p467 = pneg %p329
        $region62: #{tpu_custom_call.1} parent=11 // pred_check_branch
          %469 = sbr.rel (%p467) target = $region64
        $region63: #{tpu_custom_call.1} parent=11 // pred_region
          %s471 = ssub.s32 1024, 1024
          %472 = vsyncadd [#allocation12], %s471
          %s473 = sshll.u32 [#allocation11], 4
          %s474 = int_to_ptr.vmem [resolvable:$true] %s473
          %479 = dma.hbm_to_vmem [thread:$0]  %s13, 1024, %s474, [#allocation12], 64, 64, 4
        $region64: #{tpu_custom_call.1} parent=11 // pred_fallthru
          _
        // Predicated region
        $region65: #{tpu_custom_call.1} parent=11 // pred_check
          %p480 = pneg %p350
        $region66: #{tpu_custom_call.1} parent=11 // pred_check_branch
          %482 = sbr.rel (%p480) target = $region68
        $region67: #{tpu_custom_call.1} parent=11 // pred_region
          _
        $region68: #{tpu_custom_call.1} parent=11 // pred_fallthru
          _
      $region12: #{tpu_custom_call.1} parent=5 // pred_fallthru
        _
      %p483 = scmp.lt.s32.totalorder %s30, 2
      // Predicated region
      $region69: #{tpu_custom_call.1} parent=5 // pred_check
        %p484 = pneg %p483
      $region70: #{tpu_custom_call.1} parent=5 // pred_check_branch
        %486 = sbr.rel (%p484) target = $region72
      $region71: #{tpu_custom_call.1} parent=5 // pred_region
        // Predicated region
        $region73: #{tpu_custom_call.1} parent=71 // pred_check
          %p487 = pneg %p50
        $region74: #{tpu_custom_call.1} parent=71 // pred_check_branch
          %489 = sbr.rel (%p487) target = $region76
        $region75: #{tpu_custom_call.1} parent=71 // pred_region
          %s490 = sand.u32 %s40, 1
          %s491 = scalar_lea.sflag [#allocation3], %s490
          %s492 = sand.u32 %s40, 1
          %s493 = smul.addr %s492, 16
          %s494 = scalar_lea.vmem [#allocation2], %s493
          %s495 = smul.u32 2, %s30
          %s497 = ssub.s32 256, 256
          %498 = vsyncadd %s491, %s497
          %s499 = smul.addr %s495, 128
          %s500 = scalar_lea.hbm %s0, %s499
          %s501 = sshll.u32 %s494, 4
          %s502 = int_to_ptr.vmem [resolvable:$true] %s501
          %507 = dma.hbm_to_vmem [thread:$0]  %s500, 256, %s502, %s491, 128, 128, 8
        $region76: #{tpu_custom_call.1} parent=71 // pred_fallthru
          _
      $region72: #{tpu_custom_call.1} parent=5 // pred_fallthru
        _
      %p508 = scmp.le.s32.totalorder 1, %s30
      %p509 = scmp.lt.s32.totalorder %s30, 3
      %p510 = pnand %p508, %p509
      %p511 = pneg %p510
      // Predicated region
      $region77: #{tpu_custom_call.1} parent=5 // pred_check
        _
      $region78: #{tpu_custom_call.1} parent=5 // pred_check_branch
        %513 = sbr.rel (%p510) target = $region80
      $region79: #{tpu_custom_call.1} parent=5 // pred_region
        %s514 = ssub.s32 %s30, 1
        %s515 = sand.u32 %s43, 1
        %s516 = scalar_lea.sflag [#allocation3], %s515
        %s517 = sand.u32 %s43, 1
        %s518 = smul.addr %s517, 16
        %s519 = scalar_lea.vmem [#allocation2], %s518
        // Predicated region
        $region81: #{tpu_custom_call.1} parent=79 // pred_check
          %p520 = pneg %p56
        $region82: #{tpu_custom_call.1} parent=79 // pred_check_branch
          %522 = sbr.rel (%p520) target = $region84
        $region83: #{tpu_custom_call.1} parent=79 // pred_region
          %523 = dma.done %s516, 256
        $region84: #{tpu_custom_call.1} parent=79 // pred_fallthru
          _
        // Predicated region
        $region85: #{tpu_custom_call.1} parent=79 // pred_check
          %p524 = pneg %p77
        $region86: #{tpu_custom_call.1} parent=79 // pred_check_branch
          %526 = sbr.rel (%p524) target = $region88
        $region87: #{tpu_custom_call.1} parent=79 // pred_region
          %527 = dma.done [#allocation6], 3072
        $region88: #{tpu_custom_call.1} parent=79 // pred_fallthru
          _
        // Predicated region
        $region89: #{tpu_custom_call.1} parent=79 // pred_check
          %p528 = pneg %p119
        $region90: #{tpu_custom_call.1} parent=79 // pred_check_branch
          %530 = sbr.rel (%p528) target = $region92
        $region91: #{tpu_custom_call.1} parent=79 // pred_region
          %531 = dma.done [#allocation6], 3072
        $region92: #{tpu_custom_call.1} parent=79 // pred_fallthru
          _
        // Predicated region
        $region93: #{tpu_custom_call.1} parent=79 // pred_check
          %p532 = pneg %p203
        $region94: #{tpu_custom_call.1} parent=79 // pred_check_branch
          %534 = sbr.rel (%p532) target = $region96
        $region95: #{tpu_custom_call.1} parent=79 // pred_region
          %535 = dma.done [#allocation9], 3072
        $region96: #{tpu_custom_call.1} parent=79 // pred_fallthru
          _
        // Predicated region
        $region97: #{tpu_custom_call.1} parent=79 // pred_check
          %p536 = pneg %p245
        $region98: #{tpu_custom_call.1} parent=79 // pred_check_branch
          %538 = sbr.rel (%p536) target = $region100
        $region99: #{tpu_custom_call.1} parent=79 // pred_region
          %539 = dma.done [#allocation9], 3072
        $region100: #{tpu_custom_call.1} parent=79 // pred_fallthru
          _
        // Predicated region
        $region101: #{tpu_custom_call.1} parent=79 // pred_check
          %p540 = pneg %p329
        $region102: #{tpu_custom_call.1} parent=79 // pred_check_branch
          %542 = sbr.rel (%p540) target = $region104
        $region103: #{tpu_custom_call.1} parent=79 // pred_region
          %543 = dma.done [#allocation12], 1024
        $region104: #{tpu_custom_call.1} parent=79 // pred_fallthru
          _
        %s544 = sand.u32 %s43, 1
        %s545 = scalar_lea.sflag [#allocation3], %s544
        %s546 = sand.u32 %s43, 1
        %s547 = smul.addr %s546, 16
        %s548 = scalar_lea.vmem [#allocation2], %s547
        %p549 = pneg %p56
        %p550 = pneg %p53
        %p551 = pneg %p77
        %p552 = pneg %p74
        %p553 = pneg %p98
        %p554 = pneg %p95
        %p555 = pneg %p119
        %p556 = pneg %p116
        %p557 = pneg %p140
        %p558 = pneg %p137
        %p559 = pneg %p161
        %p560 = pneg %p158
        %p561 = pneg %p182
        %p562 = pneg %p179
        %p563 = pneg %p203
        %p564 = pneg %p200
        %p565 = pneg %p224
        %p566 = pneg %p221
        %p567 = pneg %p245
        %p568 = pneg %p242
        %p569 = pneg %p266
        %p570 = pneg %p263
        %p571 = pneg %p287
        %p572 = pneg %p284
        %p573 = pneg %p308
        %p574 = pneg %p305
        %p575 = pneg %p329
        %p576 = pneg %p326
        %p577 = pneg %p350
        %p578 = pneg %p347
        %p579 = pneg %p376
        %p580 = pneg %p373
        %s581 = sand.u32 %s363, 1
        %s582 = scalar_lea.sflag [#allocation4], %s581
        %s583 = sand.u32 %s363, 1
        %s584 = smul.addr %s583, 16
        %s585 = scalar_lea.vmem [#allocation13], %s584
        %s586 = smul.u32 2, %s35
        %s587 = smul.u32 2, %s35
        %v589 = vld [vmem:[%s519] sm:$0xff]
        %v590 = vld [vmem:[%s519 + $0x8] sm:$0xff]
        %v592 = vrot.slane %v589, 7
        %vm594 = vcmask 1040384
        %v595 = vsel %vm594, 0.0, %v592
        %v596 = vsel %vm594, %v592, 0.0
        %vm599 = vcmask 1046528
        %v600 = vrot.slane %v595, 1
        %v601 = vrot.slane %v596, 1
        %v602 = vsel %vm599, %v600, %v601
        %vm604 = vcmask 1045504
        %v605 = vrot.slane %v595, 2
        %v606 = vrot.slane %v596, 2
        %v607 = vsel %vm604, %v605, %v606
        %v610 = vrot.slane %v590, 7
        %v612 = vsel %vm594, 0.0, %v610
        %v613 = vsel %vm594, %v610, 0.0
        %v616 = vrot.slane %v612, 1
        %v617 = vrot.slane %v613, 1
        %v618 = vsel %vm599, %v616, %v617
        %v620 = vrot.slane %v612, 2
        %v621 = vrot.slane %v613, 2
        %v622 = vsel %vm604, %v620, %v621
        %v624 = vpack.c.bf16 %v612, %v595
        %v625 = vpack.c.bf16 %v618, %v602
        %v626 = vpack.c.bf16 %v622, %v607
        %v627 = vld [vmem:[#allocation5] sm:$0xf]
        %v628 = vld [vmem:[#allocation5 + $0x4] sm:$0xf]
        %v629 = vld [vmem:[#allocation5 + $0x8] sm:$0xf]
        %v630 = vld [vmem:[#allocation5 + $0xc] sm:$0xf]
        %v631 = vld [vmem:[#allocation5 + $0x10] sm:$0xf]
        %v632 = vld [vmem:[#allocation5 + $0x14] sm:$0xf]
        %v633 = vld [vmem:[#allocation5 + $0x18] sm:$0xf]
        %v634 = vld [vmem:[#allocation5 + $0x1c] sm:$0xf]
        %v635 = vld [vmem:[#allocation5 + $0x20] sm:$0xf]
        %v636 = vld [vmem:[#allocation5 + $0x24] sm:$0xf]
        %v637 = vld [vmem:[#allocation5 + $0x28] sm:$0xf]
        %v638 = vld [vmem:[#allocation5 + $0x2c] sm:$0xf]
        %v639 = vld [vmem:[#allocation5 + $0x30] sm:$0xf]
        %v640 = vld [vmem:[#allocation5 + $0x34] sm:$0xf]
        %v641 = vld [vmem:[#allocation5 + $0x38] sm:$0xf]
        %v642 = vld [vmem:[#allocation5 + $0x3c] sm:$0xf]
        %v643 = vld [vmem:[#allocation5 + $0x40] sm:$0xf]
        %v644 = vld [vmem:[#allocation5 + $0x44] sm:$0xf]
        %v645 = vld [vmem:[#allocation5 + $0x48] sm:$0xf]
        %v646 = vld [vmem:[#allocation5 + $0x4c] sm:$0xf]
        %v647 = vld [vmem:[#allocation5 + $0x50] sm:$0xf]
        %v648 = vld [vmem:[#allocation5 + $0x54] sm:$0xf]
        %v649 = vld [vmem:[#allocation5 + $0x58] sm:$0xf]
        %v650 = vld [vmem:[#allocation5 + $0x5c] sm:$0xf]
        %v651 = vld [vmem:[#allocation5 + $0x60] sm:$0xf]
        %v652 = vld [vmem:[#allocation5 + $0x64] sm:$0xf]
        %v653 = vld [vmem:[#allocation5 + $0x68] sm:$0xf]
        %v654 = vld [vmem:[#allocation5 + $0x6c] sm:$0xf]
        %v655 = vld [vmem:[#allocation5 + $0x70] sm:$0xf]
        %v656 = vld [vmem:[#allocation5 + $0x74] sm:$0xf]
        %v657 = vld [vmem:[#allocation5 + $0x78] sm:$0xf]
        %v658 = vld [vmem:[#allocation5 + $0x7c] sm:$0xf]
        %v659 = vld [vmem:[#allocation5 + $0x80] sm:$0xf]
        %v660 = vld [vmem:[#allocation5 + $0x84] sm:$0xf]
        %v661 = vld [vmem:[#allocation5 + $0x88] sm:$0xf]
        %v662 = vld [vmem:[#allocation5 + $0x8c] sm:$0xf]
        %v663 = vld [vmem:[#allocation5 + $0x90] sm:$0xf]
        %v664 = vld [vmem:[#allocation5 + $0x94] sm:$0xf]
        %v665 = vld [vmem:[#allocation5 + $0x98] sm:$0xf]
        %v666 = vld [vmem:[#allocation5 + $0x9c] sm:$0xf]
        %v667 = vld [vmem:[#allocation5 + $0xa0] sm:$0xf]
        %v668 = vld [vmem:[#allocation5 + $0xa4] sm:$0xf]
        %v669 = vld [vmem:[#allocation5 + $0xa8] sm:$0xf]
        %v670 = vld [vmem:[#allocation5 + $0xac] sm:$0xf]
        %v671 = vld [vmem:[#allocation5 + $0xb0] sm:$0xf]
        %v672 = vld [vmem:[#allocation5 + $0xb4] sm:$0xf]
        %v673 = vld [vmem:[#allocation5 + $0xb8] sm:$0xf]
        %v674 = vld [vmem:[#allocation5 + $0xbc] sm:$0xf]
        %v675 = vld [vmem:[%s2] sm:$0x1]
        %v677 = vlaneseq
        %v678 = vshrl.u32 %v677, 7
        %v679 = vsub.s32 0, %v678
        %v680 = vrot.slane %v675, %v679
        %v730 = vunpack.c.l.b16 %v627
        %v731 = vunpack.c.l.b16 %v628
        %v732 = vunpack.c.l.b16 %v629
        %v733 = vunpack.c.l.b16 %v630
        %v734 = vunpack.c.l.b16 %v631
        %v735 = vunpack.c.l.b16 %v632
        %v736 = vunpack.c.l.b16 %v633
        %v737 = vunpack.c.l.b16 %v634
        %v738 = vunpack.c.l.b16 %v635
        %v739 = vunpack.c.l.b16 %v636
        %v740 = vunpack.c.l.b16 %v637
        %v741 = vunpack.c.l.b16 %v638
        %v742 = vunpack.c.l.b16 %v639
        %v743 = vunpack.c.l.b16 %v640
        %v744 = vunpack.c.l.b16 %v641
        %v745 = vunpack.c.l.b16 %v642
        %v746 = vunpack.c.l.b16 %v643
        %v747 = vunpack.c.l.b16 %v644
        %v748 = vunpack.c.l.b16 %v645
        %v749 = vunpack.c.l.b16 %v646
        %v750 = vunpack.c.l.b16 %v647
        %v751 = vunpack.c.l.b16 %v648
        %v752 = vunpack.c.l.b16 %v649
        %v753 = vunpack.c.l.b16 %v650
        %v754 = vunpack.c.l.b16 %v651
        %v755 = vunpack.c.l.b16 %v652
        %v756 = vunpack.c.l.b16 %v653
        %v757 = vunpack.c.l.b16 %v654
        %v758 = vunpack.c.l.b16 %v655
        %v759 = vunpack.c.l.b16 %v656
        %v760 = vunpack.c.l.b16 %v657
        %v761 = vunpack.c.l.b16 %v658
        %v762 = vunpack.c.l.b16 %v659
        %v763 = vunpack.c.l.b16 %v660
        %v764 = vunpack.c.l.b16 %v661
        %v765 = vunpack.c.l.b16 %v662
        %v766 = vunpack.c.l.b16 %v663
        %v767 = vunpack.c.l.b16 %v664
        %v768 = vunpack.c.l.b16 %v665
        %v769 = vunpack.c.l.b16 %v666
        %v770 = vunpack.c.l.b16 %v667
        %v771 = vunpack.c.l.b16 %v668
        %v772 = vunpack.c.l.b16 %v669
        %v773 = vunpack.c.l.b16 %v670
        %v774 = vunpack.c.l.b16 %v671
        %v775 = vunpack.c.l.b16 %v672
        %v776 = vunpack.c.l.b16 %v673
        %v777 = vunpack.c.l.b16 %v674
        %v778 = vpack.c.b16 %v731, %v730
        %v779 = vpack.c.b16 %v733, %v732
        %v780 = vpack.c.b16 %v735, %v734
        %v781 = vpack.c.b16 %v737, %v736
        %v782 = vpack.c.b16 %v739, %v738
        %v783 = vpack.c.b16 %v741, %v740
        %v784 = vpack.c.b16 %v743, %v742
        %v785 = vpack.c.b16 %v745, %v744
        %v786 = vpack.c.b16 %v747, %v746
        %v787 = vpack.c.b16 %v749, %v748
        %v788 = vpack.c.b16 %v751, %v750
        %v789 = vpack.c.b16 %v753, %v752
        %v790 = vpack.c.b16 %v755, %v754
        %v791 = vpack.c.b16 %v757, %v756
        %v792 = vpack.c.b16 %v759, %v758
        %v793 = vpack.c.b16 %v761, %v760
        %v794 = vpack.c.b16 %v763, %v762
        %v795 = vpack.c.b16 %v765, %v764
        %v796 = vpack.c.b16 %v767, %v766
        %v797 = vpack.c.b16 %v769, %v768
        %v798 = vpack.c.b16 %v771, %v770
        %v799 = vpack.c.b16 %v773, %v772
        %v800 = vpack.c.b16 %v775, %v774
        %v801 = vpack.c.b16 %v777, %v776
        %826 = vmatprep.subr.bf16.mxu0 0
        %827 = vmatpush1.bf16.msra.mxu0 %v785
        %828 = vmatprep.subr.bf16.mxu0 0
        %829 = vmatpush1.bf16.msra.mxu0 %v784
        %830 = vmatprep.subr.bf16.mxu0 0
        %831 = vmatpush1.bf16.msra.mxu0 %v783
        %832 = vmatprep.subr.bf16.mxu0 0
        %833 = vmatpush1.bf16.msra.mxu0 %v782
        %834 = vmatprep.subr.bf16.mxu0 0
        %835 = vmatpush1.bf16.msra.mxu0 %v781
        %836 = vmatprep.subr.bf16.mxu0 0
        %837 = vmatpush1.bf16.msra.mxu0 %v780
        %838 = vmatprep.subr.bf16.mxu0 0
        %839 = vmatpush1.bf16.msra.mxu0 %v779
        %840 = vmatprep.subr.bf16.mxu0 0
        %841 = vmatpush1.bf16.msra.mxu0 %v778
        %842 = vmatprep.subr.bf16.mxu0 0
        %843 = vmatpush2.bf16.msra.mxu0 %v793
        %844 = vmatprep.subr.bf16.mxu0 0
        %845 = vmatpush2.bf16.msra.mxu0 %v792
        %846 = vmatprep.subr.bf16.mxu0 0
        %847 = vmatpush2.bf16.msra.mxu0 %v791
        %848 = vmatprep.subr.bf16.mxu0 0
        %849 = vmatpush2.bf16.msra.mxu0 %v790
        %850 = vmatprep.subr.bf16.mxu0 0
        %851 = vmatpush2.bf16.msra.mxu0 %v789
        %852 = vmatprep.subr.bf16.mxu0 0
        %853 = vmatpush2.bf16.msra.mxu0 %v788
        %854 = vmatprep.subr.bf16.mxu0 0
        %855 = vmatpush2.bf16.msra.mxu0 %v787
        %856 = vmatprep.subr.bf16.mxu0 0
        %857 = vmatpush2.bf16.msra.mxu0 %v786
        %858 = vmatprep.mubr.bf16.mxu0 %v625
        %859 = vmatmul.mubr.bf16.gmra.mxu0 %v624
        %v860 = vpop.f32.mrf.mxu0
        %v861 = vadd.f32 %v680, %v860
        %v862 = vpop.f32.mrf.mxu0
        %v863 = vpop.f32.mrf.mxu0
        %v864 = vadd.f32 %v680, %v863
        %v865 = vpop.f32.mrf.mxu0
        %866 = vdwg.mxu0
        %867 = vmatprep.subr.bf16.mxu0 0
        %868 = vmatpush1.bf16.msra.mxu0 %v801
        %869 = vmatprep.subr.bf16.mxu0 0
        %870 = vmatpush1.bf16.msra.mxu0 %v800
        %871 = vmatprep.subr.bf16.mxu0 0
        %872 = vmatpush1.bf16.msra.mxu0 %v799
        %873 = vmatprep.subr.bf16.mxu0 0
        %874 = vmatpush1.bf16.msra.mxu0 %v798
        %875 = vmatprep.subr.bf16.mxu0 0
        %876 = vmatpush1.bf16.msra.mxu0 %v797
        %877 = vmatprep.subr.bf16.mxu0 0
        %878 = vmatpush1.bf16.msra.mxu0 %v796
        %879 = vmatprep.subr.bf16.mxu0 0
        %880 = vmatpush1.bf16.msra.mxu0 %v795
        %881 = vmatprep.subr.bf16.mxu0 0
        %882 = vmatpush1.bf16.msra.mxu0 %v794
        %883 = vmatprep.subr.bf16.mxu0 0
        %884 = vmatpush2.bf16.msra.mxu0 0
        %885 = vmatprep.subr.bf16.mxu0 0
        %886 = vmatpush2.bf16.msra.mxu0 0
        %887 = vmatprep.subr.bf16.mxu0 0
        %888 = vmatpush2.bf16.msra.mxu0 0
        %889 = vmatprep.subr.bf16.mxu0 0
        %890 = vmatpush2.bf16.msra.mxu0 0
        %891 = vmatprep.subr.bf16.mxu0 0
        %892 = vmatpush2.bf16.msra.mxu0 0
        %893 = vmatprep.subr.bf16.mxu0 0
        %894 = vmatpush2.bf16.msra.mxu0 0
        %895 = vmatprep.subr.bf16.mxu0 0
        %896 = vmatpush2.bf16.msra.mxu0 0
        %897 = vmatprep.subr.bf16.mxu0 0
        %898 = vmatpush2.bf16.msra.mxu0 0
        %899 = vmatprep.mubr.bf16.mxu0 0
        %900 = vmatmul.mubr.bf16.gmra.mxu0 %v626
        %v901 = vpop.f32.mrf.mxu0
        %v902 = vadd.f32 %v861, %v901
        %v903 = vpop.f32.mrf.mxu0
        %v904 = vpop.f32.mrf.mxu0
        %v905 = vadd.f32 %v864, %v904
        %v906 = vpop.f32.mrf.mxu0
        %907 = vdwg.mxu0
        %v908 = vmax.f32 %v902, 0.0
        %v909 = vmax.f32 %v905, 0.0
        %v911 = vrot.slane %v908, 7
        %v913 = vsel %vm594, 0.0, %v911
        %v914 = vsel %vm594, %v911, 0.0
        %v917 = vrot.slane %v913, 1
        %v918 = vrot.slane %v914, 1
        %v919 = vsel %vm599, %v917, %v918
        %v921 = vrot.slane %v913, 2
        %v922 = vrot.slane %v914, 2
        %v923 = vsel %vm604, %v921, %v922
        %v926 = vrot.slane %v909, 7
        %v928 = vsel %vm594, 0.0, %v926
        %v929 = vsel %vm594, %v926, 0.0
        %v932 = vrot.slane %v928, 1
        %v933 = vrot.slane %v929, 1
        %v934 = vsel %vm599, %v932, %v933
        %v936 = vrot.slane %v928, 2
        %v937 = vrot.slane %v929, 2
        %v938 = vsel %vm604, %v936, %v937
        %v940 = vpack.c.bf16 %v928, %v913
        %v941 = vpack.c.bf16 %v934, %v919
        %v942 = vpack.c.bf16 %v938, %v923
        %v943 = vld [vmem:[#allocation7] sm:$0xf]
        %v944 = vld [vmem:[#allocation7 + $0x4] sm:$0xf]
        %v945 = vld [vmem:[#allocation7 + $0x8] sm:$0xf]
        %v946 = vld [vmem:[#allocation7 + $0xc] sm:$0xf]
        %v947 = vld [vmem:[#allocation7 + $0x10] sm:$0xf]
        %v948 = vld [vmem:[#allocation7 + $0x14] sm:$0xf]
        %v949 = vld [vmem:[#allocation7 + $0x18] sm:$0xf]
        %v950 = vld [vmem:[#allocation7 + $0x1c] sm:$0xf]
        %v951 = vld [vmem:[#allocation7 + $0x20] sm:$0xf]
        %v952 = vld [vmem:[#allocation7 + $0x24] sm:$0xf]
        %v953 = vld [vmem:[#allocation7 + $0x28] sm:$0xf]
        %v954 = vld [vmem:[#allocation7 + $0x2c] sm:$0xf]
        %v955 = vld [vmem:[#allocation7 + $0x30] sm:$0xf]
        %v956 = vld [vmem:[#allocation7 + $0x34] sm:$0xf]
        %v957 = vld [vmem:[#allocation7 + $0x38] sm:$0xf]
        %v958 = vld [vmem:[#allocation7 + $0x3c] sm:$0xf]
        %v959 = vld [vmem:[#allocation7 + $0x40] sm:$0xf]
        %v960 = vld [vmem:[#allocation7 + $0x44] sm:$0xf]
        %v961 = vld [vmem:[#allocation7 + $0x48] sm:$0xf]
        %v962 = vld [vmem:[#allocation7 + $0x4c] sm:$0xf]
        %v963 = vld [vmem:[#allocation7 + $0x50] sm:$0xf]
        %v964 = vld [vmem:[#allocation7 + $0x54] sm:$0xf]
        %v965 = vld [vmem:[#allocation7 + $0x58] sm:$0xf]
        %v966 = vld [vmem:[#allocation7 + $0x5c] sm:$0xf]
        %v967 = vld [vmem:[#allocation7 + $0x60] sm:$0xf]
        %v968 = vld [vmem:[#allocation7 + $0x64] sm:$0xf]
        %v969 = vld [vmem:[#allocation7 + $0x68] sm:$0xf]
        %v970 = vld [vmem:[#allocation7 + $0x6c] sm:$0xf]
        %v971 = vld [vmem:[#allocation7 + $0x70] sm:$0xf]
        %v972 = vld [vmem:[#allocation7 + $0x74] sm:$0xf]
        %v973 = vld [vmem:[#allocation7 + $0x78] sm:$0xf]
        %v974 = vld [vmem:[#allocation7 + $0x7c] sm:$0xf]
        %v975 = vld [vmem:[#allocation7 + $0x80] sm:$0xf]
        %v976 = vld [vmem:[#allocation7 + $0x84] sm:$0xf]
        %v977 = vld [vmem:[#allocation7 + $0x88] sm:$0xf]
        %v978 = vld [vmem:[#allocation7 + $0x8c] sm:$0xf]
        %v979 = vld [vmem:[#allocation7 + $0x90] sm:$0xf]
        %v980 = vld [vmem:[#allocation7 + $0x94] sm:$0xf]
        %v981 = vld [vmem:[#allocation7 + $0x98] sm:$0xf]
        %v982 = vld [vmem:[#allocation7 + $0x9c] sm:$0xf]
        %v983 = vld [vmem:[#allocation7 + $0xa0] sm:$0xf]
        %v984 = vld [vmem:[#allocation7 + $0xa4] sm:$0xf]
        %v985 = vld [vmem:[#allocation7 + $0xa8] sm:$0xf]
        %v986 = vld [vmem:[#allocation7 + $0xac] sm:$0xf]
        %v987 = vld [vmem:[#allocation7 + $0xb0] sm:$0xf]
        %v988 = vld [vmem:[#allocation7 + $0xb4] sm:$0xf]
        %v989 = vld [vmem:[#allocation7 + $0xb8] sm:$0xf]
        %v990 = vld [vmem:[#allocation7 + $0xbc] sm:$0xf]
        %v991 = vld [vmem:[%s4] sm:$0x1]
        %v993 = vlaneseq
        %v994 = vshrl.u32 %v993, 7
        %v995 = vsub.s32 0, %v994
        %v996 = vrot.slane %v991, %v995
        %v1046 = vunpack.c.l.b16 %v943
        %v1047 = vunpack.c.l.b16 %v944
        %v1048 = vunpack.c.l.b16 %v945
        %v1049 = vunpack.c.l.b16 %v946
        %v1050 = vunpack.c.l.b16 %v947
        %v1051 = vunpack.c.l.b16 %v948
        %v1052 = vunpack.c.l.b16 %v949
        %v1053 = vunpack.c.l.b16 %v950
        %v1054 = vunpack.c.l.b16 %v951
        %v1055 = vunpack.c.l.b16 %v952
        %v1056 = vunpack.c.l.b16 %v953
        %v1057 = vunpack.c.l.b16 %v954
        %v1058 = vunpack.c.l.b16 %v955
        %v1059 = vunpack.c.l.b16 %v956
        %v1060 = vunpack.c.l.b16 %v957
        %v1061 = vunpack.c.l.b16 %v958
        %v1062 = vunpack.c.l.b16 %v959
        %v1063 = vunpack.c.l.b16 %v960
        %v1064 = vunpack.c.l.b16 %v961
        %v1065 = vunpack.c.l.b16 %v962
        %v1066 = vunpack.c.l.b16 %v963
        %v1067 = vunpack.c.l.b16 %v964
        %v1068 = vunpack.c.l.b16 %v965
        %v1069 = vunpack.c.l.b16 %v966
        %v1070 = vunpack.c.l.b16 %v967
        %v1071 = vunpack.c.l.b16 %v968
        %v1072 = vunpack.c.l.b16 %v969
        %v1073 = vunpack.c.l.b16 %v970
        %v1074 = vunpack.c.l.b16 %v971
        %v1075 = vunpack.c.l.b16 %v972
        %v1076 = vunpack.c.l.b16 %v973
        %v1077 = vunpack.c.l.b16 %v974
        %v1078 = vunpack.c.l.b16 %v975
        %v1079 = vunpack.c.l.b16 %v976
        %v1080 = vunpack.c.l.b16 %v977
        %v1081 = vunpack.c.l.b16 %v978
        %v1082 = vunpack.c.l.b16 %v979
        %v1083 = vunpack.c.l.b16 %v980
        %v1084 = vunpack.c.l.b16 %v981
        %v1085 = vunpack.c.l.b16 %v982
        %v1086 = vunpack.c.l.b16 %v983
        %v1087 = vunpack.c.l.b16 %v984
        %v1088 = vunpack.c.l.b16 %v985
        %v1089 = vunpack.c.l.b16 %v986
        %v1090 = vunpack.c.l.b16 %v987
        %v1091 = vunpack.c.l.b16 %v988
        %v1092 = vunpack.c.l.b16 %v989
        %v1093 = vunpack.c.l.b16 %v990
        %v1094 = vpack.c.b16 %v1047, %v1046
        %v1095 = vpack.c.b16 %v1049, %v1048
        %v1096 = vpack.c.b16 %v1051, %v1050
        %v1097 = vpack.c.b16 %v1053, %v1052
        %v1098 = vpack.c.b16 %v1055, %v1054
        %v1099 = vpack.c.b16 %v1057, %v1056
        %v1100 = vpack.c.b16 %v1059, %v1058
        %v1101 = vpack.c.b16 %v1061, %v1060
        %v1102 = vpack.c.b16 %v1063, %v1062
        %v1103 = vpack.c.b16 %v1065, %v1064
        %v1104 = vpack.c.b16 %v1067, %v1066
        %v1105 = vpack.c.b16 %v1069, %v1068
        %v1106 = vpack.c.b16 %v1071, %v1070
        %v1107 = vpack.c.b16 %v1073, %v1072
        %v1108 = vpack.c.b16 %v1075, %v1074
        %v1109 = vpack.c.b16 %v1077, %v1076
        %v1110 = vpack.c.b16 %v1079, %v1078
        %v1111 = vpack.c.b16 %v1081, %v1080
        %v1112 = vpack.c.b16 %v1083, %v1082
        %v1113 = vpack.c.b16 %v1085, %v1084
        %v1114 = vpack.c.b16 %v1087, %v1086
        %v1115 = vpack.c.b16 %v1089, %v1088
        %v1116 = vpack.c.b16 %v1091, %v1090
        %v1117 = vpack.c.b16 %v1093, %v1092
        %1142 = vmatprep.subr.bf16.mxu0 0
        %1143 = vmatpush1.bf16.msra.mxu0 %v1101
        %1144 = vmatprep.subr.bf16.mxu0 0
        %1145 = vmatpush1.bf16.msra.mxu0 %v1100
        %1146 = vmatprep.subr.bf16.mxu0 0
        %1147 = vmatpush1.bf16.msra.mxu0 %v1099
        %1148 = vmatprep.subr.bf16.mxu0 0
        %1149 = vmatpush1.bf16.msra.mxu0 %v1098
        %1150 = vmatprep.subr.bf16.mxu0 0
        %1151 = vmatpush1.bf16.msra.mxu0 %v1097
        %1152 = vmatprep.subr.bf16.mxu0 0
        %1153 = vmatpush1.bf16.msra.mxu0 %v1096
        %1154 = vmatprep.subr.bf16.mxu0 0
        %1155 = vmatpush1.bf16.msra.mxu0 %v1095
        %1156 = vmatprep.subr.bf16.mxu0 0
        %1157 = vmatpush1.bf16.msra.mxu0 %v1094
        %1158 = vmatprep.subr.bf16.mxu0 0
        %1159 = vmatpush2.bf16.msra.mxu0 %v1109
        %1160 = vmatprep.subr.bf16.mxu0 0
        %1161 = vmatpush2.bf16.msra.mxu0 %v1108
        %1162 = vmatprep.subr.bf16.mxu0 0
        %1163 = vmatpush2.bf16.msra.mxu0 %v1107
        %1164 = vmatprep.subr.bf16.mxu0 0
        %1165 = vmatpush2.bf16.msra.mxu0 %v1106
        %1166 = vmatprep.subr.bf16.mxu0 0
        %1167 = vmatpush2.bf16.msra.mxu0 %v1105
        %1168 = vmatprep.subr.bf16.mxu0 0
        %1169 = vmatpush2.bf16.msra.mxu0 %v1104
        %1170 = vmatprep.subr.bf16.mxu0 0
        %1171 = vmatpush2.bf16.msra.mxu0 %v1103
        %1172 = vmatprep.subr.bf16.mxu0 0
        %1173 = vmatpush2.bf16.msra.mxu0 %v1102
        %1174 = vmatprep.mubr.bf16.mxu0 %v941
        %1175 = vmatmul.mubr.bf16.gmra.mxu0 %v940
        %v1176 = vpop.f32.mrf.mxu0
        %v1177 = vadd.f32 %v996, %v1176
        %v1178 = vpop.f32.mrf.mxu0
        %v1179 = vpop.f32.mrf.mxu0
        %v1180 = vadd.f32 %v996, %v1179
        %v1181 = vpop.f32.mrf.mxu0
        %1182 = vdwg.mxu0
        %1183 = vmatprep.subr.bf16.mxu0 0
        %1184 = vmatpush1.bf16.msra.mxu0 %v1117
        %1185 = vmatprep.subr.bf16.mxu0 0
        %1186 = vmatpush1.bf16.msra.mxu0 %v1116
        %1187 = vmatprep.subr.bf16.mxu0 0
        %1188 = vmatpush1.bf16.msra.mxu0 %v1115
        %1189 = vmatprep.subr.bf16.mxu0 0
        %1190 = vmatpush1.bf16.msra.mxu0 %v1114
        %1191 = vmatprep.subr.bf16.mxu0 0
        %1192 = vmatpush1.bf16.msra.mxu0 %v1113
        %1193 = vmatprep.subr.bf16.mxu0 0
        %1194 = vmatpush1.bf16.msra.mxu0 %v1112
        %1195 = vmatprep.subr.bf16.mxu0 0
        %1196 = vmatpush1.bf16.msra.mxu0 %v1111
        %1197 = vmatprep.subr.bf16.mxu0 0
        %1198 = vmatpush1.bf16.msra.mxu0 %v1110
        %1199 = vmatprep.subr.bf16.mxu0 0
        %1200 = vmatpush2.bf16.msra.mxu0 0
        %1201 = vmatprep.subr.bf16.mxu0 0
        %1202 = vmatpush2.bf16.msra.mxu0 0
        %1203 = vmatprep.subr.bf16.mxu0 0
        %1204 = vmatpush2.bf16.msra.mxu0 0
        %1205 = vmatprep.subr.bf16.mxu0 0
        %1206 = vmatpush2.bf16.msra.mxu0 0
        %1207 = vmatprep.subr.bf16.mxu0 0
        %1208 = vmatpush2.bf16.msra.mxu0 0
        %1209 = vmatprep.subr.bf16.mxu0 0
        %1210 = vmatpush2.bf16.msra.mxu0 0
        %1211 = vmatprep.subr.bf16.mxu0 0
        %1212 = vmatpush2.bf16.msra.mxu0 0
        %1213 = vmatprep.subr.bf16.mxu0 0
        %1214 = vmatpush2.bf16.msra.mxu0 0
        %1215 = vmatprep.mubr.bf16.mxu0 0
        %1216 = vmatmul.mubr.bf16.gmra.mxu0 %v942
        %v1217 = vpop.f32.mrf.mxu0
        %v1218 = vadd.f32 %v1177, %v1217
        %v1219 = vpop.f32.mrf.mxu0
        %v1220 = vpop.f32.mrf.mxu0
        %v1221 = vadd.f32 %v1180, %v1220
        %v1222 = vpop.f32.mrf.mxu0
        %1223 = vdwg.mxu0
        %v1224 = vmax.f32 %v1218, 0.0
        %v1225 = vmax.f32 %v1221, 0.0
        %1226 = vadd.xlane.f32.xlu0 %v1224
        %v1227 = vpop.xlane.xlu0 %1226
        %1228 = vadd.xlane.f32.xlu0 %v1225
        %v1229 = vpop.xlane.xlu0 %1228
        %v1230 = vmul.f32 %v1227, 0.03125
        %v1231 = vmul.f32 %v1229, 0.03125
        %v1232 = vmul.f32 %v1224, %v1224
        %v1233 = vmul.f32 %v1225, %v1225
        %1234 = vadd.xlane.f32.xlu0 %v1232
        %v1235 = vpop.xlane.xlu0 %1234
        %1236 = vadd.xlane.f32.xlu0 %v1233
        %v1237 = vpop.xlane.xlu0 %1236
        %v1238 = vmul.f32 %v1235, 0.03125
        %v1239 = vmul.f32 %v1237, 0.03125
        %v1240 = vmul.f32 %v1230, %v1230
        %v1241 = vmul.f32 %v1231, %v1231
        %v1242 = vsub.f32 %v1238, %v1240
        %v1243 = vsub.f32 %v1239, %v1241
        %v1244 = vsub.f32 %v1224, %v1230
        %v1245 = vsub.f32 %v1225, %v1231
        %v1246 = vadd.f32 %v1242, 1e-05
        %v1247 = vadd.f32 %v1243, 1e-05
        %v1248 = vrsqrt.pop %v1246
        %v1249 = vrsqrt.pop %v1247
        %v1250 = vmul.f32 %v1244, %v1248
        %v1251 = vmul.f32 %v1245, %v1249
        %v1252 = vld [vmem:[%s5] sm:$0x1]
        %v1254 = vlaneseq
        %v1255 = vshrl.u32 %v1254, 7
        %v1256 = vsub.s32 0, %v1255
        %v1257 = vrot.slane %v1252, %v1256
        %v1259 = vmul.f32 %v1250, %v1257
        %v1260 = vmul.f32 %v1251, %v1257
        %v1261 = vld [vmem:[%s6] sm:$0x1]
        %v1263 = vlaneseq
        %v1264 = vshrl.u32 %v1263, 7
        %v1265 = vsub.s32 0, %v1264
        %v1266 = vrot.slane %v1261, %v1265
        %v1268 = vadd.f32 %v1259, %v1266
        %v1269 = vadd.f32 %v1260, %v1266
        %v1271 = vrot.slane %v1268, 7
        %v1273 = vsel %vm594, 0.0, %v1271
        %v1274 = vsel %vm594, %v1271, 0.0
        %v1277 = vrot.slane %v1273, 1
        %v1278 = vrot.slane %v1274, 1
        %v1279 = vsel %vm599, %v1277, %v1278
        %v1281 = vrot.slane %v1273, 2
        %v1282 = vrot.slane %v1274, 2
        %v1283 = vsel %vm604, %v1281, %v1282
        %v1286 = vrot.slane %v1269, 7
        %v1288 = vsel %vm594, 0.0, %v1286
        %v1289 = vsel %vm594, %v1286, 0.0
        %v1292 = vrot.slane %v1288, 1
        %v1293 = vrot.slane %v1289, 1
        %v1294 = vsel %vm599, %v1292, %v1293
        %v1296 = vrot.slane %v1288, 2
        %v1297 = vrot.slane %v1289, 2
        %v1298 = vsel %vm604, %v1296, %v1297
        %v1300 = vpack.c.bf16 %v1288, %v1273
        %v1301 = vpack.c.bf16 %v1294, %v1279
        %v1302 = vpack.c.bf16 %v1298, %v1283
        %v1303 = vld [vmem:[#allocation8] sm:$0xf]
        %v1304 = vld [vmem:[#allocation8 + $0x4] sm:$0xf]
        %v1305 = vld [vmem:[#allocation8 + $0x8] sm:$0xf]
        %v1306 = vld [vmem:[#allocation8 + $0xc] sm:$0xf]
        %v1307 = vld [vmem:[#allocation8 + $0x10] sm:$0xf]
        %v1308 = vld [vmem:[#allocation8 + $0x14] sm:$0xf]
        %v1309 = vld [vmem:[#allocation8 + $0x18] sm:$0xf]
        %v1310 = vld [vmem:[#allocation8 + $0x1c] sm:$0xf]
        %v1311 = vld [vmem:[#allocation8 + $0x20] sm:$0xf]
        %v1312 = vld [vmem:[#allocation8 + $0x24] sm:$0xf]
        %v1313 = vld [vmem:[#allocation8 + $0x28] sm:$0xf]
        %v1314 = vld [vmem:[#allocation8 + $0x2c] sm:$0xf]
        %v1315 = vld [vmem:[#allocation8 + $0x30] sm:$0xf]
        %v1316 = vld [vmem:[#allocation8 + $0x34] sm:$0xf]
        %v1317 = vld [vmem:[#allocation8 + $0x38] sm:$0xf]
        %v1318 = vld [vmem:[#allocation8 + $0x3c] sm:$0xf]
        %v1319 = vld [vmem:[#allocation8 + $0x40] sm:$0xf]
        %v1320 = vld [vmem:[#allocation8 + $0x44] sm:$0xf]
        %v1321 = vld [vmem:[#allocation8 + $0x48] sm:$0xf]
        %v1322 = vld [vmem:[#allocation8 + $0x4c] sm:$0xf]
        %v1323 = vld [vmem:[#allocation8 + $0x50] sm:$0xf]
        %v1324 = vld [vmem:[#allocation8 + $0x54] sm:$0xf]
        %v1325 = vld [vmem:[#allocation8 + $0x58] sm:$0xf]
        %v1326 = vld [vmem:[#allocation8 + $0x5c] sm:$0xf]
        %v1327 = vld [vmem:[#allocation8 + $0x60] sm:$0xf]
        %v1328 = vld [vmem:[#allocation8 + $0x64] sm:$0xf]
        %v1329 = vld [vmem:[#allocation8 + $0x68] sm:$0xf]
        %v1330 = vld [vmem:[#allocation8 + $0x6c] sm:$0xf]
        %v1331 = vld [vmem:[#allocation8 + $0x70] sm:$0xf]
        %v1332 = vld [vmem:[#allocation8 + $0x74] sm:$0xf]
        %v1333 = vld [vmem:[#allocation8 + $0x78] sm:$0xf]
        %v1334 = vld [vmem:[#allocation8 + $0x7c] sm:$0xf]
        %v1335 = vld [vmem:[#allocation8 + $0x80] sm:$0xf]
        %v1336 = vld [vmem:[#allocation8 + $0x84] sm:$0xf]
        %v1337 = vld [vmem:[#allocation8 + $0x88] sm:$0xf]
        %v1338 = vld [vmem:[#allocation8 + $0x8c] sm:$0xf]
        %v1339 = vld [vmem:[#allocation8 + $0x90] sm:$0xf]
        %v1340 = vld [vmem:[#allocation8 + $0x94] sm:$0xf]
        %v1341 = vld [vmem:[#allocation8 + $0x98] sm:$0xf]
        %v1342 = vld [vmem:[#allocation8 + $0x9c] sm:$0xf]
        %v1343 = vld [vmem:[#allocation8 + $0xa0] sm:$0xf]
        %v1344 = vld [vmem:[#allocation8 + $0xa4] sm:$0xf]
        %v1345 = vld [vmem:[#allocation8 + $0xa8] sm:$0xf]
        %v1346 = vld [vmem:[#allocation8 + $0xac] sm:$0xf]
        %v1347 = vld [vmem:[#allocation8 + $0xb0] sm:$0xf]
        %v1348 = vld [vmem:[#allocation8 + $0xb4] sm:$0xf]
        %v1349 = vld [vmem:[#allocation8 + $0xb8] sm:$0xf]
        %v1350 = vld [vmem:[#allocation8 + $0xbc] sm:$0xf]
        %v1351 = vld [vmem:[%s8] sm:$0x1]
        %v1353 = vlaneseq
        %v1354 = vshrl.u32 %v1353, 7
        %v1355 = vsub.s32 0, %v1354
        %v1356 = vrot.slane %v1351, %v1355
        %v1406 = vunpack.c.l.b16 %v1303
        %v1407 = vunpack.c.l.b16 %v1304
        %v1408 = vunpack.c.l.b16 %v1305
        %v1409 = vunpack.c.l.b16 %v1306
        %v1410 = vunpack.c.l.b16 %v1307
        %v1411 = vunpack.c.l.b16 %v1308
        %v1412 = vunpack.c.l.b16 %v1309
        %v1413 = vunpack.c.l.b16 %v1310
        %v1414 = vunpack.c.l.b16 %v1311
        %v1415 = vunpack.c.l.b16 %v1312
        %v1416 = vunpack.c.l.b16 %v1313
        %v1417 = vunpack.c.l.b16 %v1314
        %v1418 = vunpack.c.l.b16 %v1315
        %v1419 = vunpack.c.l.b16 %v1316
        %v1420 = vunpack.c.l.b16 %v1317
        %v1421 = vunpack.c.l.b16 %v1318
        %v1422 = vunpack.c.l.b16 %v1319
        %v1423 = vunpack.c.l.b16 %v1320
        %v1424 = vunpack.c.l.b16 %v1321
        %v1425 = vunpack.c.l.b16 %v1322
        %v1426 = vunpack.c.l.b16 %v1323
        %v1427 = vunpack.c.l.b16 %v1324
        %v1428 = vunpack.c.l.b16 %v1325
        %v1429 = vunpack.c.l.b16 %v1326
        %v1430 = vunpack.c.l.b16 %v1327
        %v1431 = vunpack.c.l.b16 %v1328
        %v1432 = vunpack.c.l.b16 %v1329
        %v1433 = vunpack.c.l.b16 %v1330
        %v1434 = vunpack.c.l.b16 %v1331
        %v1435 = vunpack.c.l.b16 %v1332
        %v1436 = vunpack.c.l.b16 %v1333
        %v1437 = vunpack.c.l.b16 %v1334
        %v1438 = vunpack.c.l.b16 %v1335
        %v1439 = vunpack.c.l.b16 %v1336
        %v1440 = vunpack.c.l.b16 %v1337
        %v1441 = vunpack.c.l.b16 %v1338
        %v1442 = vunpack.c.l.b16 %v1339
        %v1443 = vunpack.c.l.b16 %v1340
        %v1444 = vunpack.c.l.b16 %v1341
        %v1445 = vunpack.c.l.b16 %v1342
        %v1446 = vunpack.c.l.b16 %v1343
        %v1447 = vunpack.c.l.b16 %v1344
        %v1448 = vunpack.c.l.b16 %v1345
        %v1449 = vunpack.c.l.b16 %v1346
        %v1450 = vunpack.c.l.b16 %v1347
        %v1451 = vunpack.c.l.b16 %v1348
        %v1452 = vunpack.c.l.b16 %v1349
        %v1453 = vunpack.c.l.b16 %v1350
        %v1454 = vpack.c.b16 %v1407, %v1406
        %v1455 = vpack.c.b16 %v1409, %v1408
        %v1456 = vpack.c.b16 %v1411, %v1410
        %v1457 = vpack.c.b16 %v1413, %v1412
        %v1458 = vpack.c.b16 %v1415, %v1414
        %v1459 = vpack.c.b16 %v1417, %v1416
        %v1460 = vpack.c.b16 %v1419, %v1418
        %v1461 = vpack.c.b16 %v1421, %v1420
        %v1462 = vpack.c.b16 %v1423, %v1422
        %v1463 = vpack.c.b16 %v1425, %v1424
        %v1464 = vpack.c.b16 %v1427, %v1426
        %v1465 = vpack.c.b16 %v1429, %v1428
        %v1466 = vpack.c.b16 %v1431, %v1430
        %v1467 = vpack.c.b16 %v1433, %v1432
        %v1468 = vpack.c.b16 %v1435, %v1434
        %v1469 = vpack.c.b16 %v1437, %v1436
        %v1470 = vpack.c.b16 %v1439, %v1438
        %v1471 = vpack.c.b16 %v1441, %v1440
        %v1472 = vpack.c.b16 %v1443, %v1442
        %v1473 = vpack.c.b16 %v1445, %v1444
        %v1474 = vpack.c.b16 %v1447, %v1446
        %v1475 = vpack.c.b16 %v1449, %v1448
        %v1476 = vpack.c.b16 %v1451, %v1450
        %v1477 = vpack.c.b16 %v1453, %v1452
        %1502 = vmatprep.subr.bf16.mxu0 0
        %1503 = vmatpush1.bf16.msra.mxu0 %v1461
        %1504 = vmatprep.subr.bf16.mxu0 0
        %1505 = vmatpush1.bf16.msra.mxu0 %v1460
        %1506 = vmatprep.subr.bf16.mxu0 0
        %1507 = vmatpush1.bf16.msra.mxu0 %v1459
        %1508 = vmatprep.subr.bf16.mxu0 0
        %1509 = vmatpush1.bf16.msra.mxu0 %v1458
        %1510 = vmatprep.subr.bf16.mxu0 0
        %1511 = vmatpush1.bf16.msra.mxu0 %v1457
        %1512 = vmatprep.subr.bf16.mxu0 0
        %1513 = vmatpush1.bf16.msra.mxu0 %v1456
        %1514 = vmatprep.subr.bf16.mxu0 0
        %1515 = vmatpush1.bf16.msra.mxu0 %v1455
        %1516 = vmatprep.subr.bf16.mxu0 0
        %1517 = vmatpush1.bf16.msra.mxu0 %v1454
        %1518 = vmatprep.subr.bf16.mxu0 0
        %1519 = vmatpush2.bf16.msra.mxu0 %v1469
        %1520 = vmatprep.subr.bf16.mxu0 0
        %1521 = vmatpush2.bf16.msra.mxu0 %v1468
        %1522 = vmatprep.subr.bf16.mxu0 0
        %1523 = vmatpush2.bf16.msra.mxu0 %v1467
        %1524 = vmatprep.subr.bf16.mxu0 0
        %1525 = vmatpush2.bf16.msra.mxu0 %v1466
        %1526 = vmatprep.subr.bf16.mxu0 0
        %1527 = vmatpush2.bf16.msra.mxu0 %v1465
        %1528 = vmatprep.subr.bf16.mxu0 0
        %1529 = vmatpush2.bf16.msra.mxu0 %v1464
        %1530 = vmatprep.subr.bf16.mxu0 0
        %1531 = vmatpush2.bf16.msra.mxu0 %v1463
        %1532 = vmatprep.subr.bf16.mxu0 0
        %1533 = vmatpush2.bf16.msra.mxu0 %v1462
        %1534 = vmatprep.mubr.bf16.mxu0 %v1301
        %1535 = vmatmul.mubr.bf16.gmra.mxu0 %v1300
        %v1536 = vpop.f32.mrf.mxu0
        %v1537 = vadd.f32 %v1356, %v1536
        %v1538 = vpop.f32.mrf.mxu0
        %v1539 = vpop.f32.mrf.mxu0
        %v1540 = vadd.f32 %v1356, %v1539
        %v1541 = vpop.f32.mrf.mxu0
        %1542 = vdwg.mxu0
        %1543 = vmatprep.subr.bf16.mxu0 0
        %1544 = vmatpush1.bf16.msra.mxu0 %v1477
        %1545 = vmatprep.subr.bf16.mxu0 0
        %1546 = vmatpush1.bf16.msra.mxu0 %v1476
        %1547 = vmatprep.subr.bf16.mxu0 0
        %1548 = vmatpush1.bf16.msra.mxu0 %v1475
        %1549 = vmatprep.subr.bf16.mxu0 0
        %1550 = vmatpush1.bf16.msra.mxu0 %v1474
        %1551 = vmatprep.subr.bf16.mxu0 0
        %1552 = vmatpush1.bf16.msra.mxu0 %v1473
        %1553 = vmatprep.subr.bf16.mxu0 0
        %1554 = vmatpush1.bf16.msra.mxu0 %v1472
        %1555 = vmatprep.subr.bf16.mxu0 0
        %1556 = vmatpush1.bf16.msra.mxu0 %v1471
        %1557 = vmatprep.subr.bf16.mxu0 0
        %1558 = vmatpush1.bf16.msra.mxu0 %v1470
        %1559 = vmatprep.subr.bf16.mxu0 0
        %1560 = vmatpush2.bf16.msra.mxu0 0
        %1561 = vmatprep.subr.bf16.mxu0 0
        %1562 = vmatpush2.bf16.msra.mxu0 0
        %1563 = vmatprep.subr.bf16.mxu0 0
        %1564 = vmatpush2.bf16.msra.mxu0 0
        %1565 = vmatprep.subr.bf16.mxu0 0
        %1566 = vmatpush2.bf16.msra.mxu0 0
        %1567 = vmatprep.subr.bf16.mxu0 0
        %1568 = vmatpush2.bf16.msra.mxu0 0
        %1569 = vmatprep.subr.bf16.mxu0 0
        %1570 = vmatpush2.bf16.msra.mxu0 0
        %1571 = vmatprep.subr.bf16.mxu0 0
        %1572 = vmatpush2.bf16.msra.mxu0 0
        %1573 = vmatprep.subr.bf16.mxu0 0
        %1574 = vmatpush2.bf16.msra.mxu0 0
        %1575 = vmatprep.mubr.bf16.mxu0 0
        %1576 = vmatmul.mubr.bf16.gmra.mxu0 %v1302
        %v1577 = vpop.f32.mrf.mxu0
        %v1578 = vadd.f32 %v1537, %v1577
        %v1579 = vpop.f32.mrf.mxu0
        %v1580 = vpop.f32.mrf.mxu0
        %v1581 = vadd.f32 %v1540, %v1580
        %v1582 = vpop.f32.mrf.mxu0
        %1583 = vdwg.mxu0
        %v1584 = vmax.f32 %v1578, 0.0
        %v1585 = vmax.f32 %v1581, 0.0
        %v1587 = vrot.slane %v1584, 7
        %v1589 = vsel %vm594, 0.0, %v1587
        %v1590 = vsel %vm594, %v1587, 0.0
        %v1593 = vrot.slane %v1589, 1
        %v1594 = vrot.slane %v1590, 1
        %v1595 = vsel %vm599, %v1593, %v1594
        %v1597 = vrot.slane %v1589, 2
        %v1598 = vrot.slane %v1590, 2
        %v1599 = vsel %vm604, %v1597, %v1598
        %v1602 = vrot.slane %v1585, 7
        %v1604 = vsel %vm594, 0.0, %v1602
        %v1605 = vsel %vm594, %v1602, 0.0
        %v1608 = vrot.slane %v1604, 1
        %v1609 = vrot.slane %v1605, 1
        %v1610 = vsel %vm599, %v1608, %v1609
        %v1612 = vrot.slane %v1604, 2
        %v1613 = vrot.slane %v1605, 2
        %v1614 = vsel %vm604, %v1612, %v1613
        %v1616 = vpack.c.bf16 %v1604, %v1589
        %v1617 = vpack.c.bf16 %v1610, %v1595
        %v1618 = vpack.c.bf16 %v1614, %v1599
        %v1619 = vld [vmem:[#allocation10] sm:$0xf]
        %v1620 = vld [vmem:[#allocation10 + $0x4] sm:$0xf]
        %v1621 = vld [vmem:[#allocation10 + $0x8] sm:$0xf]
        %v1622 = vld [vmem:[#allocation10 + $0xc] sm:$0xf]
        %v1623 = vld [vmem:[#allocation10 + $0x10] sm:$0xf]
        %v1624 = vld [vmem:[#allocation10 + $0x14] sm:$0xf]
        %v1625 = vld [vmem:[#allocation10 + $0x18] sm:$0xf]
        %v1626 = vld [vmem:[#allocation10 + $0x1c] sm:$0xf]
        %v1627 = vld [vmem:[#allocation10 + $0x20] sm:$0xf]
        %v1628 = vld [vmem:[#allocation10 + $0x24] sm:$0xf]
        %v1629 = vld [vmem:[#allocation10 + $0x28] sm:$0xf]
        %v1630 = vld [vmem:[#allocation10 + $0x2c] sm:$0xf]
        %v1631 = vld [vmem:[#allocation10 + $0x30] sm:$0xf]
        %v1632 = vld [vmem:[#allocation10 + $0x34] sm:$0xf]
        %v1633 = vld [vmem:[#allocation10 + $0x38] sm:$0xf]
        %v1634 = vld [vmem:[#allocation10 + $0x3c] sm:$0xf]
        %v1635 = vld [vmem:[#allocation10 + $0x40] sm:$0xf]
        %v1636 = vld [vmem:[#allocation10 + $0x44] sm:$0xf]
        %v1637 = vld [vmem:[#allocation10 + $0x48] sm:$0xf]
        %v1638 = vld [vmem:[#allocation10 + $0x4c] sm:$0xf]
        %v1639 = vld [vmem:[#allocation10 + $0x50] sm:$0xf]
        %v1640 = vld [vmem:[#allocation10 + $0x54] sm:$0xf]
        %v1641 = vld [vmem:[#allocation10 + $0x58] sm:$0xf]
        %v1642 = vld [vmem:[#allocation10 + $0x5c] sm:$0xf]
        %v1643 = vld [vmem:[#allocation10 + $0x60] sm:$0xf]
        %v1644 = vld [vmem:[#allocation10 + $0x64] sm:$0xf]
        %v1645 = vld [vmem:[#allocation10 + $0x68] sm:$0xf]
        %v1646 = vld [vmem:[#allocation10 + $0x6c] sm:$0xf]
        %v1647 = vld [vmem:[#allocation10 + $0x70] sm:$0xf]
        %v1648 = vld [vmem:[#allocation10 + $0x74] sm:$0xf]
        %v1649 = vld [vmem:[#allocation10 + $0x78] sm:$0xf]
        %v1650 = vld [vmem:[#allocation10 + $0x7c] sm:$0xf]
        %v1651 = vld [vmem:[#allocation10 + $0x80] sm:$0xf]
        %v1652 = vld [vmem:[#allocation10 + $0x84] sm:$0xf]
        %v1653 = vld [vmem:[#allocation10 + $0x88] sm:$0xf]
        %v1654 = vld [vmem:[#allocation10 + $0x8c] sm:$0xf]
        %v1655 = vld [vmem:[#allocation10 + $0x90] sm:$0xf]
        %v1656 = vld [vmem:[#allocation10 + $0x94] sm:$0xf]
        %v1657 = vld [vmem:[#allocation10 + $0x98] sm:$0xf]
        %v1658 = vld [vmem:[#allocation10 + $0x9c] sm:$0xf]
        %v1659 = vld [vmem:[#allocation10 + $0xa0] sm:$0xf]
        %v1660 = vld [vmem:[#allocation10 + $0xa4] sm:$0xf]
        %v1661 = vld [vmem:[#allocation10 + $0xa8] sm:$0xf]
        %v1662 = vld [vmem:[#allocation10 + $0xac] sm:$0xf]
        %v1663 = vld [vmem:[#allocation10 + $0xb0] sm:$0xf]
        %v1664 = vld [vmem:[#allocation10 + $0xb4] sm:$0xf]
        %v1665 = vld [vmem:[#allocation10 + $0xb8] sm:$0xf]
        %v1666 = vld [vmem:[#allocation10 + $0xbc] sm:$0xf]
        %v1667 = vld [vmem:[%s10] sm:$0x1]
        %v1669 = vlaneseq
        %v1670 = vshrl.u32 %v1669, 7
        %v1671 = vsub.s32 0, %v1670
        %v1672 = vrot.slane %v1667, %v1671
        %v1722 = vunpack.c.l.b16 %v1619
        %v1723 = vunpack.c.l.b16 %v1620
        %v1724 = vunpack.c.l.b16 %v1621
        %v1725 = vunpack.c.l.b16 %v1622
        %v1726 = vunpack.c.l.b16 %v1623
        %v1727 = vunpack.c.l.b16 %v1624
        %v1728 = vunpack.c.l.b16 %v1625
        %v1729 = vunpack.c.l.b16 %v1626
        %v1730 = vunpack.c.l.b16 %v1627
        %v1731 = vunpack.c.l.b16 %v1628
        %v1732 = vunpack.c.l.b16 %v1629
        %v1733 = vunpack.c.l.b16 %v1630
        %v1734 = vunpack.c.l.b16 %v1631
        %v1735 = vunpack.c.l.b16 %v1632
        %v1736 = vunpack.c.l.b16 %v1633
        %v1737 = vunpack.c.l.b16 %v1634
        %v1738 = vunpack.c.l.b16 %v1635
        %v1739 = vunpack.c.l.b16 %v1636
        %v1740 = vunpack.c.l.b16 %v1637
        %v1741 = vunpack.c.l.b16 %v1638
        %v1742 = vunpack.c.l.b16 %v1639
        %v1743 = vunpack.c.l.b16 %v1640
        %v1744 = vunpack.c.l.b16 %v1641
        %v1745 = vunpack.c.l.b16 %v1642
        %v1746 = vunpack.c.l.b16 %v1643
        %v1747 = vunpack.c.l.b16 %v1644
        %v1748 = vunpack.c.l.b16 %v1645
        %v1749 = vunpack.c.l.b16 %v1646
        %v1750 = vunpack.c.l.b16 %v1647
        %v1751 = vunpack.c.l.b16 %v1648
        %v1752 = vunpack.c.l.b16 %v1649
        %v1753 = vunpack.c.l.b16 %v1650
        %v1754 = vunpack.c.l.b16 %v1651
        %v1755 = vunpack.c.l.b16 %v1652
        %v1756 = vunpack.c.l.b16 %v1653
        %v1757 = vunpack.c.l.b16 %v1654
        %v1758 = vunpack.c.l.b16 %v1655
        %v1759 = vunpack.c.l.b16 %v1656
        %v1760 = vunpack.c.l.b16 %v1657
        %v1761 = vunpack.c.l.b16 %v1658
        %v1762 = vunpack.c.l.b16 %v1659
        %v1763 = vunpack.c.l.b16 %v1660
        %v1764 = vunpack.c.l.b16 %v1661
        %v1765 = vunpack.c.l.b16 %v1662
        %v1766 = vunpack.c.l.b16 %v1663
        %v1767 = vunpack.c.l.b16 %v1664
        %v1768 = vunpack.c.l.b16 %v1665
        %v1769 = vunpack.c.l.b16 %v1666
        %v1770 = vpack.c.b16 %v1723, %v1722
        %v1771 = vpack.c.b16 %v1725, %v1724
        %v1772 = vpack.c.b16 %v1727, %v1726
        %v1773 = vpack.c.b16 %v1729, %v1728
        %v1774 = vpack.c.b16 %v1731, %v1730
        %v1775 = vpack.c.b16 %v1733, %v1732
        %v1776 = vpack.c.b16 %v1735, %v1734
        %v1777 = vpack.c.b16 %v1737, %v1736
        %v1778 = vpack.c.b16 %v1739, %v1738
        %v1779 = vpack.c.b16 %v1741, %v1740
        %v1780 = vpack.c.b16 %v1743, %v1742
        %v1781 = vpack.c.b16 %v1745, %v1744
        %v1782 = vpack.c.b16 %v1747, %v1746
        %v1783 = vpack.c.b16 %v1749, %v1748
        %v1784 = vpack.c.b16 %v1751, %v1750
        %v1785 = vpack.c.b16 %v1753, %v1752
        %v1786 = vpack.c.b16 %v1755, %v1754
        %v1787 = vpack.c.b16 %v1757, %v1756
        %v1788 = vpack.c.b16 %v1759, %v1758
        %v1789 = vpack.c.b16 %v1761, %v1760
        %v1790 = vpack.c.b16 %v1763, %v1762
        %v1791 = vpack.c.b16 %v1765, %v1764
        %v1792 = vpack.c.b16 %v1767, %v1766
        %v1793 = vpack.c.b16 %v1769, %v1768
        %1818 = vmatprep.subr.bf16.mxu0 0
        %1819 = vmatpush1.bf16.msra.mxu0 %v1777
        %1820 = vmatprep.subr.bf16.mxu0 0
        %1821 = vmatpush1.bf16.msra.mxu0 %v1776
        %1822 = vmatprep.subr.bf16.mxu0 0
        %1823 = vmatpush1.bf16.msra.mxu0 %v1775
        %1824 = vmatprep.subr.bf16.mxu0 0
        %1825 = vmatpush1.bf16.msra.mxu0 %v1774
        %1826 = vmatprep.subr.bf16.mxu0 0
        %1827 = vmatpush1.bf16.msra.mxu0 %v1773
        %1828 = vmatprep.subr.bf16.mxu0 0
        %1829 = vmatpush1.bf16.msra.mxu0 %v1772
        %1830 = vmatprep.subr.bf16.mxu0 0
        %1831 = vmatpush1.bf16.msra.mxu0 %v1771
        %1832 = vmatprep.subr.bf16.mxu0 0
        %1833 = vmatpush1.bf16.msra.mxu0 %v1770
        %1834 = vmatprep.subr.bf16.mxu0 0
        %1835 = vmatpush2.bf16.msra.mxu0 %v1785
        %1836 = vmatprep.subr.bf16.mxu0 0
        %1837 = vmatpush2.bf16.msra.mxu0 %v1784
        %1838 = vmatprep.subr.bf16.mxu0 0
        %1839 = vmatpush2.bf16.msra.mxu0 %v1783
        %1840 = vmatprep.subr.bf16.mxu0 0
        %1841 = vmatpush2.bf16.msra.mxu0 %v1782
        %1842 = vmatprep.subr.bf16.mxu0 0
        %1843 = vmatpush2.bf16.msra.mxu0 %v1781
        %1844 = vmatprep.subr.bf16.mxu0 0
        %1845 = vmatpush2.bf16.msra.mxu0 %v1780
        %1846 = vmatprep.subr.bf16.mxu0 0
        %1847 = vmatpush2.bf16.msra.mxu0 %v1779
        %1848 = vmatprep.subr.bf16.mxu0 0
        %1849 = vmatpush2.bf16.msra.mxu0 %v1778
        %1850 = vmatprep.mubr.bf16.mxu0 %v1617
        %1851 = vmatmul.mubr.bf16.gmra.mxu0 %v1616
        %v1852 = vpop.f32.mrf.mxu0
        %v1853 = vadd.f32 %v1672, %v1852
        %v1854 = vpop.f32.mrf.mxu0
        %v1855 = vpop.f32.mrf.mxu0
        %v1856 = vadd.f32 %v1672, %v1855
        %v1857 = vpop.f32.mrf.mxu0
        %1858 = vdwg.mxu0
        %1859 = vmatprep.subr.bf16.mxu0 0
        %1860 = vmatpush1.bf16.msra.mxu0 %v1793
        %1861 = vmatprep.subr.bf16.mxu0 0
        %1862 = vmatpush1.bf16.msra.mxu0 %v1792
        %1863 = vmatprep.subr.bf16.mxu0 0
        %1864 = vmatpush1.bf16.msra.mxu0 %v1791
        %1865 = vmatprep.subr.bf16.mxu0 0
        %1866 = vmatpush1.bf16.msra.mxu0 %v1790
        %1867 = vmatprep.subr.bf16.mxu0 0
        %1868 = vmatpush1.bf16.msra.mxu0 %v1789
        %1869 = vmatprep.subr.bf16.mxu0 0
        %1870 = vmatpush1.bf16.msra.mxu0 %v1788
        %1871 = vmatprep.subr.bf16.mxu0 0
        %1872 = vmatpush1.bf16.msra.mxu0 %v1787
        %1873 = vmatprep.subr.bf16.mxu0 0
        %1874 = vmatpush1.bf16.msra.mxu0 %v1786
        %1875 = vmatprep.subr.bf16.mxu0 0
        %1876 = vmatpush2.bf16.msra.mxu0 0
        %1877 = vmatprep.subr.bf16.mxu0 0
        %1878 = vmatpush2.bf16.msra.mxu0 0
        %1879 = vmatprep.subr.bf16.mxu0 0
        %1880 = vmatpush2.bf16.msra.mxu0 0
        %1881 = vmatprep.subr.bf16.mxu0 0
        %1882 = vmatpush2.bf16.msra.mxu0 0
        %1883 = vmatprep.subr.bf16.mxu0 0
        %1884 = vmatpush2.bf16.msra.mxu0 0
        %1885 = vmatprep.subr.bf16.mxu0 0
        %1886 = vmatpush2.bf16.msra.mxu0 0
        %1887 = vmatprep.subr.bf16.mxu0 0
        %1888 = vmatpush2.bf16.msra.mxu0 0
        %1889 = vmatprep.subr.bf16.mxu0 0
        %1890 = vmatpush2.bf16.msra.mxu0 0
        %1891 = vmatprep.mubr.bf16.mxu0 0
        %1892 = vmatmul.mubr.bf16.gmra.mxu0 %v1618
        %v1893 = vpop.f32.mrf.mxu0
        %v1894 = vadd.f32 %v1853, %v1893
        %v1895 = vpop.f32.mrf.mxu0
        %v1896 = vpop.f32.mrf.mxu0
        %v1897 = vadd.f32 %v1856, %v1896
        %v1898 = vpop.f32.mrf.mxu0
        %1899 = vdwg.mxu0
        %v1900 = vmax.f32 %v1894, 0.0
        %v1901 = vmax.f32 %v1897, 0.0
        %1902 = vadd.xlane.f32.xlu0 %v1900
        %v1903 = vpop.xlane.xlu0 %1902
        %1904 = vadd.xlane.f32.xlu0 %v1901
        %v1905 = vpop.xlane.xlu0 %1904
        %v1906 = vmul.f32 %v1903, 0.03125
        %v1907 = vmul.f32 %v1905, 0.03125
        %v1908 = vmul.f32 %v1900, %v1900
        %v1909 = vmul.f32 %v1901, %v1901
        %1910 = vadd.xlane.f32.xlu0 %v1908
        %v1911 = vpop.xlane.xlu0 %1910
        %1912 = vadd.xlane.f32.xlu0 %v1909
        %v1913 = vpop.xlane.xlu0 %1912
        %v1914 = vmul.f32 %v1911, 0.03125
        %v1915 = vmul.f32 %v1913, 0.03125
        %v1916 = vmul.f32 %v1906, %v1906
        %v1917 = vmul.f32 %v1907, %v1907
        %v1918 = vsub.f32 %v1914, %v1916
        %v1919 = vsub.f32 %v1915, %v1917
        %v1920 = vsub.f32 %v1900, %v1906
        %v1921 = vsub.f32 %v1901, %v1907
        %v1922 = vadd.f32 %v1918, 1e-05
        %v1923 = vadd.f32 %v1919, 1e-05
        %v1924 = vrsqrt.pop %v1922
        %v1925 = vrsqrt.pop %v1923
        %v1926 = vmul.f32 %v1920, %v1924
        %v1927 = vmul.f32 %v1921, %v1925
        %v1928 = vld [vmem:[%s11] sm:$0x1]
        %v1930 = vlaneseq
        %v1931 = vshrl.u32 %v1930, 7
        %v1932 = vsub.s32 0, %v1931
        %v1933 = vrot.slane %v1928, %v1932
        %v1935 = vmul.f32 %v1926, %v1933
        %v1936 = vmul.f32 %v1927, %v1933
        %v1937 = vld [vmem:[%s12] sm:$0x1]
        %v1939 = vlaneseq
        %v1940 = vshrl.u32 %v1939, 7
        %v1941 = vsub.s32 0, %v1940
        %v1942 = vrot.slane %v1937, %v1941
        %v1944 = vadd.f32 %v1935, %v1942
        %v1945 = vadd.f32 %v1936, %v1942
        %v1946 = vpack.c.bf16 %v1945, %v1944
        %v1947 = vld [vmem:[#allocation11] sm:$0xf]
        %v1948 = vld [vmem:[#allocation11 + $0x4] sm:$0xf]
        %v1949 = vld [vmem:[#allocation11 + $0x8] sm:$0xf]
        %v1950 = vld [vmem:[#allocation11 + $0xc] sm:$0xf]
        %v1951 = vld [vmem:[#allocation11 + $0x10] sm:$0xf]
        %v1952 = vld [vmem:[#allocation11 + $0x14] sm:$0xf]
        %v1953 = vld [vmem:[#allocation11 + $0x18] sm:$0xf]
        %v1954 = vld [vmem:[#allocation11 + $0x1c] sm:$0xf]
        %v1955 = vld [vmem:[#allocation11 + $0x20] sm:$0xf]
        %v1956 = vld [vmem:[#allocation11 + $0x24] sm:$0xf]
        %v1957 = vld [vmem:[#allocation11 + $0x28] sm:$0xf]
        %v1958 = vld [vmem:[#allocation11 + $0x2c] sm:$0xf]
        %v1959 = vld [vmem:[#allocation11 + $0x30] sm:$0xf]
        %v1960 = vld [vmem:[#allocation11 + $0x34] sm:$0xf]
        %v1961 = vld [vmem:[#allocation11 + $0x38] sm:$0xf]
        %v1962 = vld [vmem:[#allocation11 + $0x3c] sm:$0xf]
        %v1963 = vld [vmem:[%s14] sm:$0x1]
        %v1965 = vlaneseq
        %v1966 = vshrl.u32 %v1965, 7
        %v1967 = vsub.s32 0, %v1966
        %v1968 = vrot.slane %v1963, %v1967
        %v1986 = vunpack.c.l.b16 %v1947
        %v1987 = vunpack.c.l.b16 %v1948
        %v1988 = vunpack.c.l.b16 %v1949
        %v1989 = vunpack.c.l.b16 %v1950
        %v1990 = vunpack.c.l.b16 %v1951
        %v1991 = vunpack.c.l.b16 %v1952
        %v1992 = vunpack.c.l.b16 %v1953
        %v1993 = vunpack.c.l.b16 %v1954
        %v1994 = vunpack.c.l.b16 %v1955
        %v1995 = vunpack.c.l.b16 %v1956
        %v1996 = vunpack.c.l.b16 %v1957
        %v1997 = vunpack.c.l.b16 %v1958
        %v1998 = vunpack.c.l.b16 %v1959
        %v1999 = vunpack.c.l.b16 %v1960
        %v2000 = vunpack.c.l.b16 %v1961
        %v2001 = vunpack.c.l.b16 %v1962
        %v2002 = vpack.c.b16 %v1987, %v1986
        %v2003 = vpack.c.b16 %v1989, %v1988
        %v2004 = vpack.c.b16 %v1991, %v1990
        %v2005 = vpack.c.b16 %v1993, %v1992
        %v2006 = vpack.c.b16 %v1995, %v1994
        %v2007 = vpack.c.b16 %v1997, %v1996
        %v2008 = vpack.c.b16 %v1999, %v1998
        %v2009 = vpack.c.b16 %v2001, %v2000
        %2018 = vmatprep.subr.bf16.mxu0 0
        %2019 = vmatpush1.bf16.msra.mxu0 %v2009
        %2020 = vmatprep.subr.bf16.mxu0 0
        %2021 = vmatpush1.bf16.msra.mxu0 %v2008
        %2022 = vmatprep.subr.bf16.mxu0 0
        %2023 = vmatpush1.bf16.msra.mxu0 %v2007
        %2024 = vmatprep.subr.bf16.mxu0 0
        %2025 = vmatpush1.bf16.msra.mxu0 %v2006
        %2026 = vmatprep.subr.bf16.mxu0 0
        %2027 = vmatpush1.bf16.msra.mxu0 %v2005
        %2028 = vmatprep.subr.bf16.mxu0 0
        %2029 = vmatpush1.bf16.msra.mxu0 %v2004
        %2030 = vmatprep.subr.bf16.mxu0 0
        %2031 = vmatpush1.bf16.msra.mxu0 %v2003
        %2032 = vmatprep.subr.bf16.mxu0 0
        %2033 = vmatpush1.bf16.msra.mxu0 %v2002
        %2034 = vmatprep.subr.bf16.mxu0 0
        %2035 = vmatpush2.bf16.msra.mxu0 0
        %2036 = vmatprep.subr.bf16.mxu0 0
        %2037 = vmatpush2.bf16.msra.mxu0 0
        %2038 = vmatprep.subr.bf16.mxu0 0
        %2039 = vmatpush2.bf16.msra.mxu0 0
        %2040 = vmatprep.subr.bf16.mxu0 0
        %2041 = vmatpush2.bf16.msra.mxu0 0
        %2042 = vmatprep.subr.bf16.mxu0 0
        %2043 = vmatpush2.bf16.msra.mxu0 0
        %2044 = vmatprep.subr.bf16.mxu0 0
        %2045 = vmatpush2.bf16.msra.mxu0 0
        %2046 = vmatprep.subr.bf16.mxu0 0
        %2047 = vmatpush2.bf16.msra.mxu0 0
        %2048 = vmatprep.subr.bf16.mxu0 0
        %2049 = vmatpush2.bf16.msra.mxu0 0
        %2050 = vmatprep.mubr.bf16.mxu0 0
        %2051 = vmatmul.mubr.bf16.gmra.mxu0 %v1946
        %v2052 = vpop.f32.mrf.mxu0
        %v2053 = vadd.f32 %v1968, %v2052
        %v2054 = vpop.f32.mrf.mxu0
        %v2055 = vpop.f32.mrf.mxu0
        %v2056 = vadd.f32 %v1968, %v2055
        %v2057 = vpop.f32.mrf.mxu0
        %2058 = vdwg.mxu0
        %2059 = vst [vmem:[%s585] sm:$0xff] %v2053
        %2060 = vst [vmem:[%s585 + $0x8] sm:$0xff] %v2056
        %s2061 = sand.u32 %s363, 1
        %s2062 = scalar_lea.sflag [#allocation4], %s2061
        %s2063 = sand.u32 %s363, 1
        %s2064 = smul.addr %s2063, 16
        %s2065 = scalar_lea.vmem [#allocation13], %s2064
        // Predicated region
        $region105: #{tpu_custom_call.1} parent=79 // pred_check
          %p2066 = pneg %p373
        $region106: #{tpu_custom_call.1} parent=79 // pred_check_branch
          %2068 = sbr.rel (%p2066) target = $region108
        $region107: #{tpu_custom_call.1} parent=79 // pred_region
          %s2069 = smul.u32 2, %s35
          %s2071 = ssub.s32 256, 256
          %2072 = vsyncadd %s2062, %s2071
          %s2073 = smul.addr %s2069, 128
          %s2074 = scalar_lea.hbm %s15, %s2073
          %s2075 = sshll.u32 %s2065, 4
          %s2076 = int_to_ptr.vmem [resolvable:$true] %s2075
          %2081 = dma.vmem_to_hbm [thread:$0]  %s2076, 256, %s2074, %s2062, 128, 128, 8
        $region108: #{tpu_custom_call.1} parent=79 // pred_fallthru
          _
      $region80: #{tpu_custom_call.1} parent=5 // pred_fallthru
        _
      %p2082 = scmp.le.s32.totalorder 2, %s30
      // Predicated region
      $region109: #{tpu_custom_call.1} parent=5 // pred_check
        %p2083 = pneg %p2082
      $region110: #{tpu_custom_call.1} parent=5 // pred_check_branch
        %2085 = sbr.rel (%p2083) target = $region112
      $region111: #{tpu_custom_call.1} parent=5 // pred_region
        %s2086 = ssub.s32 %s30, 2
        // Predicated region
        $region113: #{tpu_custom_call.1} parent=111 // pred_check
          %p2087 = pneg %p379
        $region114: #{tpu_custom_call.1} parent=111 // pred_check_branch
          %2089 = sbr.rel (%p2087) target = $region116
        $region115: #{tpu_custom_call.1} parent=111 // pred_region
          %s2090 = sand.u32 %s364, 1
          %s2091 = scalar_lea.sflag [#allocation4], %s2090
          %s2092 = sand.u32 %s364, 1
          %s2093 = smul.addr %s2092, 16
          %s2094 = scalar_lea.vmem [#allocation13], %s2093
          %2095 = dma.done %s2091, 256
        $region116: #{tpu_custom_call.1} parent=111 // pred_fallthru
          _
      $region112: #{tpu_custom_call.1} parent=5 // pred_fallthru
        _
    $region6: #{tpu_custom_call.1} parent=1 // loop_footer
      %s34 = sadd.s32 1, %s30
    $region7: #{tpu_custom_call.1} parent=1 // loop_footer_branch
      %29 = sbr.rel target = $region3
    $region8: #{tpu_custom_call.1} parent=1 // loop_exit
      _
    %2096 = vsyncpa [#allocation3], 1
    %s2097 = scalar_lea.sflag [#allocation3], 1
    %2098 = vsyncpa %s2097, 1
    %2099 = vsyncpa [#allocation6], 1
    %2100 = vsyncpa [#allocation9], 1
    %2101 = vsyncpa [#allocation12], 1
    %2102 = vsyncpa [#allocation4], 1
    %s2103 = scalar_lea.sflag [#allocation4], 1
    %2104 = vsyncpa %s2103, 1

</llo_original>
